<compile_context>
chip_gen: v7x
topology: tpu7x:2x2x1
jax: 0.10.0
libtpu: 0.0.40
codegen_flags: <defaults>
</compile_context>

<pallas_src>
import functools

import jax
import jax.numpy as jnp
from jax.experimental import pallas as pl
from jax.experimental.pallas import tpu as pltpu


def _decoder_gru_kernel(ids_ref,                     # SMEM (T, B) int32  (scalar prefetch)
                        h0_ref, emb_ref,             # VMEM (B, H) f32, (V, E) f32
                        wih_ref, whh_ref,            # VMEM (E, 3H) bf16, (H, 3H) bf16
                        bih_ref, bhh_ref,            # VMEM (1, 3H) f32, (1, 3H) f32
                        wout_ref, bout_ref,          # VMEM (H, V) bf16, (1, V) f32
                        y_ref, hout_ref,             # out: (1, B, V) f32 per step, (B, H) f32 resident
                        x_scratch):                  # VMEM (B, E) f32 scratch
    """One decode step per grid point: gather -> relu -> GRU cell -> Linear -> LogSoftmax."""
    t = pl.program_id(0)
    B, H = hout_ref.shape

    # Initialize the resident hidden-state block from h0 on the first step only.
    @pl.when(t == 0)
    def _():
        hout_ref[...] = h0_ref[...]

    # In-kernel embedding gather: table is VMEM-resident, ids come from SMEM.
    for b in range(B):                                   # B is small & static
        idx = ids_ref[t, b]
        x_scratch[pl.ds(b, 1), :] = emb_ref[pl.ds(idx, 1), :]

    # relu(dropout(embedded)); dropout is identity in eval mode / p == 0.
    x = jnp.maximum(x_scratch[...], 0.0).astype(jnp.bfloat16)   # (B, E)
    h = hout_ref[...]                                            # (B, H) f32

    # Two FLOP-minimal gate dots (pre-transposed lane-dense weights, f32 acc).
    gi = jnp.dot(x, wih_ref[...], preferred_element_type=jnp.float32) + bih_ref[...]
    gh = jnp.dot(h.astype(jnp.bfloat16), whh_ref[...],
                 preferred_element_type=jnp.float32) + bhh_ref[...]

    # PyTorch GRU gate order [r, z, n]; H is a multiple of 128 -> aligned slices.
    r = jax.nn.sigmoid(gi[:, 0 * H:1 * H] + gh[:, 0 * H:1 * H])
    z = jax.nn.sigmoid(gi[:, 1 * H:2 * H] + gh[:, 1 * H:2 * H])
    n = jnp.tanh(gi[:, 2 * H:3 * H] + r * gh[:, 2 * H:3 * H])
    h_new = (1.0 - z) * n + z * h                                # (B, H) f32
    hout_ref[...] = h_new                                        # stays VMEM-resident

    # Output projection + numerically stable log-softmax (dim=1), all f32 math.
    logits = jnp.dot(h_new.astype(jnp.bfloat16), wout_ref[...],
                     preferred_element_type=jnp.float32) + bout_ref[...]     # (B, V)
    m = jnp.max(logits, axis=1, keepdims=True)
    s = logits - m
    y_ref[0] = s - jnp.log(jnp.sum(jnp.exp(s), axis=1, keepdims=True))


def prepare_decoder_params(params):
    """One-time layout change outside the kernel: transpose + bf16-cast weights."""
    H = params["w_hh"].shape[1]
    V = params["w_out"].shape[0]
    return {
        "embedding": params["embedding"].astype(jnp.float32),        # (V, E)
        "w_ih_t": params["w_ih"].T.astype(jnp.bfloat16),              # (E, 3H)
        "w_hh_t": params["w_hh"].T.astype(jnp.bfloat16),              # (H, 3H)
        "b_ih": params["b_ih"].reshape(1, 3 * H).astype(jnp.float32),
        "b_hh": params["b_hh"].reshape(1, 3 * H).astype(jnp.float32),
        "w_out_t": params["w_out"].T.astype(jnp.bfloat16),            # (H, V)
        "b_out": params["b_out"].reshape(1, V).astype(jnp.float32),
    }


def _decode_impl(input_ids, hidden, prep):
    """Fused multi-step decode: input_ids (T, B) int32, hidden (1, B, H) f32."""
    T, B = input_ids.shape
    Vocab, E = prep["embedding"].shape
    H = hidden.shape[-1]

    cost = pl.CostEstimate(
        flops=int(T * (2 * B * (E + H) * 3 * H + 2 * B * H * Vocab)),
        transcendentals=int(T * B * (3 * H + Vocab)),
        bytes_accessed=int(Vocab * E * 4 + ((E + H) * 3 * H + H * Vocab) * 2
                           + (6 * H + Vocab) * 4 + 2 * B * H * 4
                           + T * B * 4 + T * B * Vocab * 4),
    )

    y_all, h_new = pl.pallas_call(
        _decoder_gru_kernel,
        grid_spec=pltpu.PrefetchScalarGridSpec(
            num_scalar_prefetch=1,                 # ids -> SMEM, visible to index_maps & kernel
            grid=(T,),
            in_specs=[
                pl.BlockSpec((B, H), lambda t, ids: (0, 0)),          # h0 (read once)
                pl.BlockSpec((Vocab, E), lambda t, ids: (0, 0)),      # embedding table (resident)
                pl.BlockSpec((E, 3 * H), lambda t, ids: (0, 0)),      # W_ih^T (resident)
                pl.BlockSpec((H, 3 * H), lambda t, ids: (0, 0)),      # W_hh^T (resident)
                pl.BlockSpec((1, 3 * H), lambda t, ids: (0, 0)),      # b_ih
                pl.BlockSpec((1, 3 * H), lambda t, ids: (0, 0)),      # b_hh
                pl.BlockSpec((H, Vocab), lambda t, ids: (0, 0)),      # W_out^T (resident)
                pl.BlockSpec((1, Vocab), lambda t, ids: (0, 0)),      # b_out
            ],
            out_specs=(
                pl.BlockSpec((1, B, Vocab), lambda t, ids: (t, 0, 0)),  # per-step log-probs
                pl.BlockSpec((B, H), lambda t, ids: (0, 0)),            # hidden (resident acc)
            ),
            scratch_shapes=[pltpu.VMEM((B, E), jnp.float32)],           # gathered embedding rows
        ),
        out_shape=(
            jax.ShapeDtypeStruct((T, B, Vocab), jnp.float32),
            jax.ShapeDtypeStruct((B, H), jnp.float32),
        ),
        compiler_params=pltpu.CompilerParams(dimension_semantics=("arbitrary",)),
        cost_estimate=cost,
    )(input_ids, hidden[0], prep["embedding"], prep["w_ih_t"], prep["w_hh_t"],
      prep["b_ih"], prep["b_hh"], prep["w_out_t"], prep["b_out"])

    return y_all, h_new[None, :, :]


decoder_rnn_decode = jax.jit(_decode_impl)


@functools.partial(jax.jit, static_argnums=(1,))
def decoder_rnn_forward(input_ids, batch_size, hidden, prep):
    """Module-equivalent single step: input_ids (1, batch_size) -> ((B, V), (1, B, H))."""
    y_all, h_new = _decode_impl(input_ids.reshape(1, batch_size).astype(jnp.int32),
                                hidden, prep)
    return y_all[0], h_new


def decoder_rnn_reference_step(ids_1b, batch_size, hidden, params):
    """Pure-JAX f32 reference matching the PyTorch module for one step."""
    emb = params["embedding"][ids_1b.reshape(-1)].reshape(batch_size, -1)
    x = jnp.maximum(emb, 0.0)
    h = hidden[0]
    H = params["w_hh"].shape[1]
    gi = x @ params["w_ih"].T + params["b_ih"]
    gh = h @ params["w_hh"].T + params["b_hh"]
    r = jax.nn.sigmoid(gi[:, :H] + gh[:, :H])
    z = jax.nn.sigmoid(gi[:, H:2 * H] + gh[:, H:2 * H])
    n = jnp.tanh(gi[:, 2 * H:] + r * gh[:, 2 * H:])
    h_new = (1.0 - z) * n + z * h
    logits = h_new @ params["w_out"].T + params["b_out"]
    return jax.nn.log_softmax(logits, axis=1), h_new[None, :, :]


def decoder_rnn_reference_decode(ids_tb, hidden, params):
    B = ids_tb.shape[1]
    ys = []
    h = hidden
    for t in range(ids_tb.shape[0]):
        y, h = decoder_rnn_reference_step(ids_tb[t:t + 1], B, h, params)
        ys.append(y)
    return jnp.stack(ys, axis=0), h


def init_params(key, *, embedding_size, hidden_size, output_size):
    """Deterministic init in PyTorch layout: W_ih (3H,E), W_hh (3H,H), W_out (V,H)."""
    ks = jax.random.split(key, 7)
    s = 0.1
    return {
        "embedding": s * jax.random.normal(ks[0], (output_size, embedding_size), jnp.float32),
        "w_ih": s * jax.random.normal(ks[1], (3 * hidden_size, embedding_size), jnp.float32),
        "w_hh": s * jax.random.normal(ks[2], (3 * hidden_size, hidden_size), jnp.float32),
        "b_ih": s * jax.random.normal(ks[3], (3 * hidden_size,), jnp.float32),
        "b_hh": s * jax.random.normal(ks[4], (3 * hidden_size,), jnp.float32),
        "w_out": s * jax.random.normal(ks[5], (output_size, hidden_size), jnp.float32),
        "b_out": s * jax.random.normal(ks[6], (output_size,), jnp.float32),
    }


if __name__ == "__main__":
    # Config: cell_type='GRU', num_layers_decoder=1, bi_directional=False,
    # drop_out=0.0.  B raised to 16 (bf16 sublane pack); E, H, V multiples of 128.
    B, E, H, V, T = 16, 128, 128, 256, 12

    key = jax.random.PRNGKey(0)
    k_params, k_ids, k_hid = jax.random.split(key, 3)

    params = init_params(k_params, embedding_size=E, hidden_size=H, output_size=V)
    prep = prepare_decoder_params(params)

    ids_seq = jax.random.randint(k_ids, (T, B), 0, V, dtype=jnp.int32)   # T decode steps
    hidden0 = 0.1 * jax.random.normal(k_hid, (1, B, H), jnp.float32)     # (L*D, B, H)

    # Fused multi-step decode (one pallas_call for all T steps).
    y_all, hidden_T = decoder_rnn_decode(ids_seq, hidden0, prep)
    jax.block_until_ready((y_all, hidden_T))

    y_ref_all, h_ref_T = decoder_rnn_reference_decode(ids_seq, hidden0, params)

    assert y_all.shape == (T, B, V)
    assert hidden_T.shape == (1, B, H)
    assert bool(jnp.allclose(jnp.sum(jnp.exp(y_all), axis=-1), 1.0, atol=1e-4))
    assert bool(jnp.allclose(y_all, y_ref_all, atol=3e-2))
    assert bool(jnp.allclose(hidden_T, h_ref_T, atol=3e-2))

    # Module-API parity: single forward step (T == 1) matches nn.Module.forward.
    y1, h1 = decoder_rnn_forward(ids_seq[0:1], B, hidden0, prep)
    jax.block_until_ready((y1, h1))
    y1_ref, h1_ref = decoder_rnn_reference_step(ids_seq[0:1], B, hidden0, params)
    assert y1.shape == (B, V) and h1.shape == (1, B, H)
    assert bool(jnp.allclose(y1, y1_ref, atol=3e-2))
    assert bool(jnp.allclose(h1, h1_ref, atol=3e-2))

    print("KERNEL_OK")
</pallas_src>

<mosaic_0001>
module attributes {stable_mosaic.version = 11 : i64} {
  func.func @_decoder_gru_kernel(%arg0: i32, %arg1: memref<12x16xi32, #tpu.memory_space<smem>>, %arg2: memref<16x128xf32, #tpu.memory_space<vmem>>, %arg3: memref<256x128xf32, #tpu.memory_space<vmem>>, %arg4: memref<128x384xbf16, #tpu.memory_space<vmem>>, %arg5: memref<128x384xbf16, #tpu.memory_space<vmem>>, %arg6: memref<1x384xf32, #tpu.memory_space<vmem>>, %arg7: memref<1x384xf32, #tpu.memory_space<vmem>>, %arg8: memref<128x256xbf16, #tpu.memory_space<vmem>>, %arg9: memref<1x256xf32, #tpu.memory_space<vmem>>, %arg10: memref<1x16x256xf32, #tpu.memory_space<vmem>>, %arg11: memref<16x128xf32, #tpu.memory_space<vmem>>, %arg12: memref<16x128xf32, #tpu.memory_space<vmem>>) attributes {dimension_semantics = [#tpu.dimension_semantics<arbitrary>], iteration_bounds = array<i64: 12>, scalar_prefetch = 1 : i64, scratch_operands = 1 : i64, tpu.core_type = #tpu.core_type<tc>, window_params = [{pipeline_mode = #tpu.pipeline_mode<synchronous>, transform_indices = @transform_0, window_bounds = array<i64: 16, 128>}, {pipeline_mode = #tpu.pipeline_mode<synchronous>, transform_indices = @transform_1, window_bounds = array<i64: 256, 128>}, {pipeline_mode = #tpu.pipeline_mode<synchronous>, transform_indices = @transform_2, window_bounds = array<i64: 128, 384>}, {pipeline_mode = #tpu.pipeline_mode<synchronous>, transform_indices = @transform_3, window_bounds = array<i64: 128, 384>}, {pipeline_mode = #tpu.pipeline_mode<synchronous>, transform_indices = @transform_4, window_bounds = array<i64: 1, 384>}, {pipeline_mode = #tpu.pipeline_mode<synchronous>, transform_indices = @transform_5, window_bounds = array<i64: 1, 384>}, {pipeline_mode = #tpu.pipeline_mode<synchronous>, transform_indices = @transform_6, window_bounds = array<i64: 128, 256>}, {pipeline_mode = #tpu.pipeline_mode<synchronous>, transform_indices = @transform_7, window_bounds = array<i64: 1, 256>}, {transform_indices = @transform_8, window_bounds = array<i64: 1, 16, 256>}, {pipeline_mode = #tpu.pipeline_mode<synchronous>, transform_indices = @transform_9, window_bounds = array<i64: 16, 128>}]} {
    %c0_i32 = arith.constant 0 : i32
    %0 = arith.cmpi eq, %arg0, %c0_i32 : i32
    %1 = arith.extui %0 : i1 to i32
    %c0_i32_0 = arith.constant 0 : i32
    %2 = arith.cmpi ne, %1, %c0_i32_0 : i32
    scf.if %2 {
      %c0_78 = arith.constant 0 : index
      %c0_79 = arith.constant 0 : index
      %145 = vector.load %arg2[%c0_78, %c0_79] : memref<16x128xf32, #tpu.memory_space<vmem>>, vector<16x128xf32>
      %c0_80 = arith.constant 0 : index
      %c0_81 = arith.constant 0 : index
      %146 = vector.load %arg11[%c0_80, %c0_81] : memref<16x128xf32, #tpu.memory_space<vmem>>, vector<16x128xf32>
      tpu.vector_store %arg11[%c0_80, %c0_81], %145 {strides = array<i32>} : memref<16x128xf32, #tpu.memory_space<vmem>>, vector<16x128xf32>,
    } else {
    }
    %3 = arith.index_cast %arg0 : i32 to index
    %c0 = arith.constant 0 : index
    %4 = memref.load %arg1[%3, %c0] : memref<12x16xi32, #tpu.memory_space<smem>>
    %5 = arith.index_cast %4 : i32 to index
    %c0_1 = arith.constant 0 : index
    %6 = vector.load %arg3[%5, %c0_1] : memref<256x128xf32, #tpu.memory_space<vmem>>, vector<1x128xf32>
    %c0_2 = arith.constant 0 : index
    %c0_3 = arith.constant 0 : index
    %7 = vector.load %arg12[%c0_2, %c0_3] : memref<16x128xf32, #tpu.memory_space<vmem>>, vector<1x128xf32>
    tpu.vector_store %arg12[%c0_2, %c0_3], %6 {strides = array<i32>} : memref<16x128xf32, #tpu.memory_space<vmem>>, vector<1x128xf32>,
    %8 = arith.index_cast %arg0 : i32 to index
    %c1 = arith.constant 1 : index
    %9 = memref.load %arg1[%8, %c1] : memref<12x16xi32, #tpu.memory_space<smem>>
    %10 = arith.index_cast %9 : i32 to index
    %c0_4 = arith.constant 0 : index
    %11 = vector.load %arg3[%10, %c0_4] : memref<256x128xf32, #tpu.memory_space<vmem>>, vector<1x128xf32>
    %c1_5 = arith.constant 1 : index
    %c0_6 = arith.constant 0 : index
    %12 = vector.load %arg12[%c1_5, %c0_6] : memref<16x128xf32, #tpu.memory_space<vmem>>, vector<1x128xf32>
    tpu.vector_store %arg12[%c1_5, %c0_6], %11 {strides = array<i32>} : memref<16x128xf32, #tpu.memory_space<vmem>>, vector<1x128xf32>,
    %13 = arith.index_cast %arg0 : i32 to index
    %c2 = arith.constant 2 : index
    %14 = memref.load %arg1[%13, %c2] : memref<12x16xi32, #tpu.memory_space<smem>>
    %15 = arith.index_cast %14 : i32 to index
    %c0_7 = arith.constant 0 : index
    %16 = vector.load %arg3[%15, %c0_7] : memref<256x128xf32, #tpu.memory_space<vmem>>, vector<1x128xf32>
    %c2_8 = arith.constant 2 : index
    %c0_9 = arith.constant 0 : index
    %17 = vector.load %arg12[%c2_8, %c0_9] : memref<16x128xf32, #tpu.memory_space<vmem>>, vector<1x128xf32>
    tpu.vector_store %arg12[%c2_8, %c0_9], %16 {strides = array<i32>} : memref<16x128xf32, #tpu.memory_space<vmem>>, vector<1x128xf32>,
    %18 = arith.index_cast %arg0 : i32 to index
    %c3 = arith.constant 3 : index
    %19 = memref.load %arg1[%18, %c3] : memref<12x16xi32, #tpu.memory_space<smem>>
    %20 = arith.index_cast %19 : i32 to index
    %c0_10 = arith.constant 0 : index
    %21 = vector.load %arg3[%20, %c0_10] : memref<256x128xf32, #tpu.memory_space<vmem>>, vector<1x128xf32>
    %c3_11 = arith.constant 3 : index
    %c0_12 = arith.constant 0 : index
    %22 = vector.load %arg12[%c3_11, %c0_12] : memref<16x128xf32, #tpu.memory_space<vmem>>, vector<1x128xf32>
    tpu.vector_store %arg12[%c3_11, %c0_12], %21 {strides = array<i32>} : memref<16x128xf32, #tpu.memory_space<vmem>>, vector<1x128xf32>,
    %23 = arith.index_cast %arg0 : i32 to index
    %c4 = arith.constant 4 : index
    %24 = memref.load %arg1[%23, %c4] : memref<12x16xi32, #tpu.memory_space<smem>>
    %25 = arith.index_cast %24 : i32 to index
    %c0_13 = arith.constant 0 : index
    %26 = vector.load %arg3[%25, %c0_13] : memref<256x128xf32, #tpu.memory_space<vmem>>, vector<1x128xf32>
    %c4_14 = arith.constant 4 : index
    %c0_15 = arith.constant 0 : index
    %27 = vector.load %arg12[%c4_14, %c0_15] : memref<16x128xf32, #tpu.memory_space<vmem>>, vector<1x128xf32>
    tpu.vector_store %arg12[%c4_14, %c0_15], %26 {strides = array<i32>} : memref<16x128xf32, #tpu.memory_space<vmem>>, vector<1x128xf32>,
    %28 = arith.index_cast %arg0 : i32 to index
    %c5 = arith.constant 5 : index
    %29 = memref.load %arg1[%28, %c5] : memref<12x16xi32, #tpu.memory_space<smem>>
    %30 = arith.index_cast %29 : i32 to index
    %c0_16 = arith.constant 0 : index
    %31 = vector.load %arg3[%30, %c0_16] : memref<256x128xf32, #tpu.memory_space<vmem>>, vector<1x128xf32>
    %c5_17 = arith.constant 5 : index
    %c0_18 = arith.constant 0 : index
    %32 = vector.load %arg12[%c5_17, %c0_18] : memref<16x128xf32, #tpu.memory_space<vmem>>, vector<1x128xf32>
    tpu.vector_store %arg12[%c5_17, %c0_18], %31 {strides = array<i32>} : memref<16x128xf32, #tpu.memory_space<vmem>>, vector<1x128xf32>,
    %33 = arith.index_cast %arg0 : i32 to index
    %c6 = arith.constant 6 : index
    %34 = memref.load %arg1[%33, %c6] : memref<12x16xi32, #tpu.memory_space<smem>>
    %35 = arith.index_cast %34 : i32 to index
    %c0_19 = arith.constant 0 : index
    %36 = vector.load %arg3[%35, %c0_19] : memref<256x128xf32, #tpu.memory_space<vmem>>, vector<1x128xf32>
    %c6_20 = arith.constant 6 : index
    %c0_21 = arith.constant 0 : index
    %37 = vector.load %arg12[%c6_20, %c0_21] : memref<16x128xf32, #tpu.memory_space<vmem>>, vector<1x128xf32>
    tpu.vector_store %arg12[%c6_20, %c0_21], %36 {strides = array<i32>} : memref<16x128xf32, #tpu.memory_space<vmem>>, vector<1x128xf32>,
    %38 = arith.index_cast %arg0 : i32 to index
    %c7 = arith.constant 7 : index
    %39 = memref.load %arg1[%38, %c7] : memref<12x16xi32, #tpu.memory_space<smem>>
    %40 = arith.index_cast %39 : i32 to index
    %c0_22 = arith.constant 0 : index
    %41 = vector.load %arg3[%40, %c0_22] : memref<256x128xf32, #tpu.memory_space<vmem>>, vector<1x128xf32>
    %c7_23 = arith.constant 7 : index
    %c0_24 = arith.constant 0 : index
    %42 = vector.load %arg12[%c7_23, %c0_24] : memref<16x128xf32, #tpu.memory_space<vmem>>, vector<1x128xf32>
    tpu.vector_store %arg12[%c7_23, %c0_24], %41 {strides = array<i32>} : memref<16x128xf32, #tpu.memory_space<vmem>>, vector<1x128xf32>,
    %43 = arith.index_cast %arg0 : i32 to index
    %c8 = arith.constant 8 : index
    %44 = memref.load %arg1[%43, %c8] : memref<12x16xi32, #tpu.memory_space<smem>>
    %45 = arith.index_cast %44 : i32 to index
    %c0_25 = arith.constant 0 : index
    %46 = vector.load %arg3[%45, %c0_25] : memref<256x128xf32, #tpu.memory_space<vmem>>, vector<1x128xf32>
    %c8_26 = arith.constant 8 : index
    %c0_27 = arith.constant 0 : index
    %47 = vector.load %arg12[%c8_26, %c0_27] : memref<16x128xf32, #tpu.memory_space<vmem>>, vector<1x128xf32>
    tpu.vector_store %arg12[%c8_26, %c0_27], %46 {strides = array<i32>} : memref<16x128xf32, #tpu.memory_space<vmem>>, vector<1x128xf32>,
    %48 = arith.index_cast %arg0 : i32 to index
    %c9 = arith.constant 9 : index
    %49 = memref.load %arg1[%48, %c9] : memref<12x16xi32, #tpu.memory_space<smem>>
    %50 = arith.index_cast %49 : i32 to index
    %c0_28 = arith.constant 0 : index
    %51 = vector.load %arg3[%50, %c0_28] : memref<256x128xf32, #tpu.memory_space<vmem>>, vector<1x128xf32>
    %c9_29 = arith.constant 9 : index
    %c0_30 = arith.constant 0 : index
    %52 = vector.load %arg12[%c9_29, %c0_30] : memref<16x128xf32, #tpu.memory_space<vmem>>, vector<1x128xf32>
    tpu.vector_store %arg12[%c9_29, %c0_30], %51 {strides = array<i32>} : memref<16x128xf32, #tpu.memory_space<vmem>>, vector<1x128xf32>,
    %53 = arith.index_cast %arg0 : i32 to index
    %c10 = arith.constant 10 : index
    %54 = memref.load %arg1[%53, %c10] : memref<12x16xi32, #tpu.memory_space<smem>>
    %55 = arith.index_cast %54 : i32 to index
    %c0_31 = arith.constant 0 : index
    %56 = vector.load %arg3[%55, %c0_31] : memref<256x128xf32, #tpu.memory_space<vmem>>, vector<1x128xf32>
    %c10_32 = arith.constant 10 : index
    %c0_33 = arith.constant 0 : index
    %57 = vector.load %arg12[%c10_32, %c0_33] : memref<16x128xf32, #tpu.memory_space<vmem>>, vector<1x128xf32>
    tpu.vector_store %arg12[%c10_32, %c0_33], %56 {strides = array<i32>} : memref<16x128xf32, #tpu.memory_space<vmem>>, vector<1x128xf32>,
    %58 = arith.index_cast %arg0 : i32 to index
    %c11 = arith.constant 11 : index
    %59 = memref.load %arg1[%58, %c11] : memref<12x16xi32, #tpu.memory_space<smem>>
    %60 = arith.index_cast %59 : i32 to index
    %c0_34 = arith.constant 0 : index
    %61 = vector.load %arg3[%60, %c0_34] : memref<256x128xf32, #tpu.memory_space<vmem>>, vector<1x128xf32>
    %c11_35 = arith.constant 11 : index
    %c0_36 = arith.constant 0 : index
    %62 = vector.load %arg12[%c11_35, %c0_36] : memref<16x128xf32, #tpu.memory_space<vmem>>, vector<1x128xf32>
    tpu.vector_store %arg12[%c11_35, %c0_36], %61 {strides = array<i32>} : memref<16x128xf32, #tpu.memory_space<vmem>>, vector<1x128xf32>,
    %63 = arith.index_cast %arg0 : i32 to index
    %c12 = arith.constant 12 : index
    %64 = memref.load %arg1[%63, %c12] : memref<12x16xi32, #tpu.memory_space<smem>>
    %65 = arith.index_cast %64 : i32 to index
    %c0_37 = arith.constant 0 : index
    %66 = vector.load %arg3[%65, %c0_37] : memref<256x128xf32, #tpu.memory_space<vmem>>, vector<1x128xf32>
    %c12_38 = arith.constant 12 : index
    %c0_39 = arith.constant 0 : index
    %67 = vector.load %arg12[%c12_38, %c0_39] : memref<16x128xf32, #tpu.memory_space<vmem>>, vector<1x128xf32>
    tpu.vector_store %arg12[%c12_38, %c0_39], %66 {strides = array<i32>} : memref<16x128xf32, #tpu.memory_space<vmem>>, vector<1x128xf32>,
    %68 = arith.index_cast %arg0 : i32 to index
    %c13 = arith.constant 13 : index
    %69 = memref.load %arg1[%68, %c13] : memref<12x16xi32, #tpu.memory_space<smem>>
    %70 = arith.index_cast %69 : i32 to index
    %c0_40 = arith.constant 0 : index
    %71 = vector.load %arg3[%70, %c0_40] : memref<256x128xf32, #tpu.memory_space<vmem>>, vector<1x128xf32>
    %c13_41 = arith.constant 13 : index
    %c0_42 = arith.constant 0 : index
    %72 = vector.load %arg12[%c13_41, %c0_42] : memref<16x128xf32, #tpu.memory_space<vmem>>, vector<1x128xf32>
    tpu.vector_store %arg12[%c13_41, %c0_42], %71 {strides = array<i32>} : memref<16x128xf32, #tpu.memory_space<vmem>>, vector<1x128xf32>,
    %73 = arith.index_cast %arg0 : i32 to index
    %c14 = arith.constant 14 : index
    %74 = memref.load %arg1[%73, %c14] : memref<12x16xi32, #tpu.memory_space<smem>>
    %75 = arith.index_cast %74 : i32 to index
    %c0_43 = arith.constant 0 : index
    %76 = vector.load %arg3[%75, %c0_43] : memref<256x128xf32, #tpu.memory_space<vmem>>, vector<1x128xf32>
    %c14_44 = arith.constant 14 : index
    %c0_45 = arith.constant 0 : index
    %77 = vector.load %arg12[%c14_44, %c0_45] : memref<16x128xf32, #tpu.memory_space<vmem>>, vector<1x128xf32>
    tpu.vector_store %arg12[%c14_44, %c0_45], %76 {strides = array<i32>} : memref<16x128xf32, #tpu.memory_space<vmem>>, vector<1x128xf32>,
    %78 = arith.index_cast %arg0 : i32 to index
    %c15 = arith.constant 15 : index
    %79 = memref.load %arg1[%78, %c15] : memref<12x16xi32, #tpu.memory_space<smem>>
    %80 = arith.index_cast %79 : i32 to index
    %c0_46 = arith.constant 0 : index
    %81 = vector.load %arg3[%80, %c0_46] : memref<256x128xf32, #tpu.memory_space<vmem>>, vector<1x128xf32>
    %c15_47 = arith.constant 15 : index
    %c0_48 = arith.constant 0 : index
    %82 = vector.load %arg12[%c15_47, %c0_48] : memref<16x128xf32, #tpu.memory_space<vmem>>, vector<1x128xf32>
    tpu.vector_store %arg12[%c15_47, %c0_48], %81 {strides = array<i32>} : memref<16x128xf32, #tpu.memory_space<vmem>>, vector<1x128xf32>,
    %c0_49 = arith.constant 0 : index
    %c0_50 = arith.constant 0 : index
    %83 = vector.load %arg12[%c0_49, %c0_50] : memref<16x128xf32, #tpu.memory_space<vmem>>, vector<16x128xf32>
    %cst = arith.constant 0.000000e+00 : f32
    %84 = vector.broadcast %cst : f32 to vector<16x128xf32>
    %85 = arith.maximumf %83, %84 : vector<16x128xf32>
    %86 = arith.truncf %85 : vector<16x128xf32> to vector<16x128xbf16>
    %c0_51 = arith.constant 0 : index
    %c0_52 = arith.constant 0 : index
    %87 = vector.load %arg11[%c0_51, %c0_52] : memref<16x128xf32, #tpu.memory_space<vmem>>, vector<16x128xf32>
    %c0_53 = arith.constant 0 : index
    %c0_54 = arith.constant 0 : index
    %88 = vector.load %arg4[%c0_53, %c0_54] : memref<128x384xbf16, #tpu.memory_space<vmem>>, vector<128x384xbf16>
    %cst_55 = arith.constant dense<0.000000e+00> : vector<16x384xf32>
    %89 = tpu.matmul %86, %88, %cst_55 {dimension_numbers = #tpu.dot_dimension_numbers<[1], [0], [0], [1], [0, 0, 1, 1], [], []>} : vector<16x128xbf16>, vector<128x384xbf16>, vector<16x384xf32> -> vector<16x384xf32>
    %c0_56 = arith.constant 0 : index
    %c0_57 = arith.constant 0 : index
    %90 = vector.load %arg6[%c0_56, %c0_57] : memref<1x384xf32, #tpu.memory_space<vmem>>, vector<1x384xf32>
    %91 = vector.broadcast %90 : vector<1x384xf32> to vector<16x384xf32>
    %92 = arith.addf %89, %91 : vector<16x384xf32>
    %93 = arith.truncf %87 : vector<16x128xf32> to vector<16x128xbf16>
    %c0_58 = arith.constant 0 : index
    %c0_59 = arith.constant 0 : index
    %94 = vector.load %arg5[%c0_58, %c0_59] : memref<128x384xbf16, #tpu.memory_space<vmem>>, vector<128x384xbf16>
    %cst_60 = arith.constant dense<0.000000e+00> : vector<16x384xf32>
    %95 = tpu.matmul %93, %94, %cst_60 {dimension_numbers = #tpu.dot_dimension_numbers<[1], [0], [0], [1], [0, 0, 1, 1], [], []>} : vector<16x128xbf16>, vector<128x384xbf16>, vector<16x384xf32> -> vector<16x384xf32>
    %c0_61 = arith.constant 0 : index
    %c0_62 = arith.constant 0 : index
    %96 = vector.load %arg7[%c0_61, %c0_62] : memref<1x384xf32, #tpu.memory_space<vmem>>, vector<1x384xf32>
    %97 = vector.broadcast %96 : vector<1x384xf32> to vector<16x384xf32>
    %98 = arith.addf %95, %97 : vector<16x384xf32>
    %99 = vector.extract_strided_slice %92 {offsets = [0, 0], sizes = [16, 128], strides = [1, 1]} : vector<16x384xf32> to vector<16x128xf32>
    %100 = vector.extract_strided_slice %98 {offsets = [0, 0], sizes = [16, 128], strides = [1, 1]} : vector<16x384xf32> to vector<16x128xf32>
    %101 = arith.addf %99, %100 : vector<16x128xf32>
    %102 = arith.negf %101 : vector<16x128xf32>
    %103 = math.exp %102 : vector<16x128xf32>
    %cst_63 = arith.constant 1.000000e+00 : f32
    %104 = vector.broadcast %cst_63 : f32 to vector<16x128xf32>
    %105 = arith.addf %104, %103 : vector<16x128xf32>
    %106 = arith.divf %104, %105 : vector<16x128xf32>
    %107 = vector.extract_strided_slice %92 {offsets = [0, 128], sizes = [16, 128], strides = [1, 1]} : vector<16x384xf32> to vector<16x128xf32>
    %108 = vector.extract_strided_slice %98 {offsets = [0, 128], sizes = [16, 128], strides = [1, 1]} : vector<16x384xf32> to vector<16x128xf32>
    %109 = arith.addf %107, %108 : vector<16x128xf32>
    %110 = arith.negf %109 : vector<16x128xf32>
    %111 = math.exp %110 : vector<16x128xf32>
    %cst_64 = arith.constant 1.000000e+00 : f32
    %112 = vector.broadcast %cst_64 : f32 to vector<16x128xf32>
    %113 = arith.addf %112, %111 : vector<16x128xf32>
    %114 = arith.divf %112, %113 : vector<16x128xf32>
    %115 = vector.extract_strided_slice %92 {offsets = [0, 256], sizes = [16, 128], strides = [1, 1]} : vector<16x384xf32> to vector<16x128xf32>
    %116 = vector.extract_strided_slice %98 {offsets = [0, 256], sizes = [16, 128], strides = [1, 1]} : vector<16x384xf32> to vector<16x128xf32>
    %117 = arith.mulf %106, %116 : vector<16x128xf32>
    %118 = arith.addf %115, %117 : vector<16x128xf32>
    %119 = math.tanh %118 : vector<16x128xf32>
    %cst_65 = arith.constant 1.000000e+00 : f32
    %120 = vector.broadcast %cst_65 : f32 to vector<16x128xf32>
    %121 = arith.subf %120, %114 : vector<16x128xf32>
    %122 = arith.mulf %121, %119 : vector<16x128xf32>
    %123 = arith.mulf %114, %87 : vector<16x128xf32>
    %124 = arith.addf %122, %123 : vector<16x128xf32>
    %c0_66 = arith.constant 0 : index
    %c0_67 = arith.constant 0 : index
    %125 = vector.load %arg11[%c0_66, %c0_67] : memref<16x128xf32, #tpu.memory_space<vmem>>, vector<16x128xf32>
    tpu.vector_store %arg11[%c0_66, %c0_67], %124 {strides = array<i32>} : memref<16x128xf32, #tpu.memory_space<vmem>>, vector<16x128xf32>,
    %126 = arith.truncf %124 : vector<16x128xf32> to vector<16x128xbf16>
    %c0_68 = arith.constant 0 : index
    %c0_69 = arith.constant 0 : index
    %127 = vector.load %arg8[%c0_68, %c0_69] : memref<128x256xbf16, #tpu.memory_space<vmem>>, vector<128x256xbf16>
    %cst_70 = arith.constant dense<0.000000e+00> : vector<16x256xf32>
    %128 = tpu.matmul %126, %127, %cst_70 {dimension_numbers = #tpu.dot_dimension_numbers<[1], [0], [0], [1], [0, 0, 1, 1], [], []>} : vector<16x128xbf16>, vector<128x256xbf16>, vector<16x256xf32> -> vector<16x256xf32>
    %c0_71 = arith.constant 0 : index
    %c0_72 = arith.constant 0 : index
    %129 = vector.load %arg9[%c0_71, %c0_72] : memref<1x256xf32, #tpu.memory_space<vmem>>, vector<1x256xf32>
    %130 = vector.broadcast %129 : vector<1x256xf32> to vector<16x256xf32>
    %131 = arith.addf %128, %130 : vector<16x256xf32>
    %cst_73 = arith.constant dense<0xFF800000> : vector<16xf32>
    %132 = vector.multi_reduction <maximumf>, %131, %cst_73 [1] : vector<16x256xf32> to vector<16xf32>
    %133 = vector.shape_cast %132 : vector<16xf32> to vector<16x1xf32>
    %134 = vector.broadcast %133 : vector<16x1xf32> to vector<16x256xf32>
    %135 = arith.subf %131, %134 : vector<16x256xf32>
    %136 = math.exp %135 : vector<16x256xf32>
    %cst_74 = arith.constant dense<0.000000e+00> : vector<16xf32>
    %137 = vector.multi_reduction <add>, %136, %cst_74 [1] : vector<16x256xf32> to vector<16xf32>
    %138 = vector.shape_cast %137 : vector<16xf32> to vector<16x1xf32>
    %139 = math.log %138 : vector<16x1xf32>
    %140 = vector.broadcast %139 : vector<16x1xf32> to vector<16x256xf32>
    %141 = arith.subf %135, %140 : vector<16x256xf32>
    %c0_75 = arith.constant 0 : index
    %c0_76 = arith.constant 0 : index
    %c0_77 = arith.constant 0 : index
    %142 = vector.load %arg10[%c0_75, %c0_76, %c0_77] : memref<1x16x256xf32, #tpu.memory_space<vmem>>, vector<1x16x256xf32>
    %143 = vector.shape_cast %142 : vector<1x16x256xf32> to vector<16x256xf32>
    %144 = vector.shape_cast %141 : vector<16x256xf32> to vector<1x16x256xf32>
    tpu.vector_store %arg10[%c0_75, %c0_76, %c0_77], %144 {strides = array<i32>} : memref<1x16x256xf32, #tpu.memory_space<vmem>>, vector<1x16x256xf32>,
    return
  }
  func.func @transform_0(%arg0: i32, %arg1: memref<12x16xi32, #tpu.memory_space<smem>>) -> (i32, i32) {
    %c0_i32 = arith.constant 0 : i32
    %c0_i32_0 = arith.constant 0 : i32
    %c0_i32_1 = arith.constant 0 : i32
    return %c0_i32, %c0_i32_0 : i32, i32
  }
  func.func @transform_1(%arg0: i32, %arg1: memref<12x16xi32, #tpu.memory_space<smem>>) -> (i32, i32) {
    %c0_i32 = arith.constant 0 : i32
    %c0_i32_0 = arith.constant 0 : i32
    %c0_i32_1 = arith.constant 0 : i32
    return %c0_i32, %c0_i32_0 : i32, i32
  }
  func.func @transform_2(%arg0: i32, %arg1: memref<12x16xi32, #tpu.memory_space<smem>>) -> (i32, i32) {
    %c0_i32 = arith.constant 0 : i32
    %c0_i32_0 = arith.constant 0 : i32
    %c0_i32_1 = arith.constant 0 : i32
    return %c0_i32, %c0_i32_0 : i32, i32
  }
  func.func @transform_3(%arg0: i32, %arg1: memref<12x16xi32, #tpu.memory_space<smem>>) -> (i32, i32) {
    %c0_i32 = arith.constant 0 : i32
    %c0_i32_0 = arith.constant 0 : i32
    %c0_i32_1 = arith.constant 0 : i32
    return %c0_i32, %c0_i32_0 : i32, i32
  }
  func.func @transform_4(%arg0: i32, %arg1: memref<12x16xi32, #tpu.memory_space<smem>>) -> (i32, i32) {
    %c0_i32 = arith.constant 0 : i32
    %c0_i32_0 = arith.constant 0 : i32
    %c0_i32_1 = arith.constant 0 : i32
    return %c0_i32, %c0_i32_0 : i32, i32
  }
  func.func @transform_5(%arg0: i32, %arg1: memref<12x16xi32, #tpu.memory_space<smem>>) -> (i32, i32) {
    %c0_i32 = arith.constant 0 : i32
    %c0_i32_0 = arith.constant 0 : i32
    %c0_i32_1 = arith.constant 0 : i32
    return %c0_i32, %c0_i32_0 : i32, i32
  }
  func.func @transform_6(%arg0: i32, %arg1: memref<12x16xi32, #tpu.memory_space<smem>>) -> (i32, i32) {
    %c0_i32 = arith.constant 0 : i32
    %c0_i32_0 = arith.constant 0 : i32
    %c0_i32_1 = arith.constant 0 : i32
    return %c0_i32, %c0_i32_0 : i32, i32
  }
  func.func @transform_7(%arg0: i32, %arg1: memref<12x16xi32, #tpu.memory_space<smem>>) -> (i32, i32) {
    %c0_i32 = arith.constant 0 : i32
    %c0_i32_0 = arith.constant 0 : i32
    %c0_i32_1 = arith.constant 0 : i32
    return %c0_i32, %c0_i32_0 : i32, i32
  }
  func.func @transform_8(%arg0: i32, %arg1: memref<12x16xi32, #tpu.memory_space<smem>>) -> (i32, i32, i32) {
    %c0_i32 = arith.constant 0 : i32
    %c0_i32_0 = arith.constant 0 : i32
    %c0_i32_1 = arith.constant 0 : i32
    return %arg0, %c0_i32, %c0_i32_0 : i32, i32, i32
  }
  func.func @transform_9(%arg0: i32, %arg1: memref<12x16xi32, #tpu.memory_space<smem>>) -> (i32, i32) {
    %c0_i32 = arith.constant 0 : i32
    %c0_i32_0 = arith.constant 0 : i32
    %c0_i32_1 = arith.constant 0 : i32
    return %c0_i32, %c0_i32_0 : i32, i32
  }
}

</mosaic_0001>

<llo_original>
// kernel: _decode_impl.1
$region0: #{_decode_impl.1}
  #allocation0 [shape = 'u32[]', space=smem, size = 0x4, offset = 0x4, fixed_abs, tag = 'smem constant byte address 0x4 - core index']
  #allocation1 [shape = 'u32[144,128]{1,0:T(1,128)}', space=vmem, size = 0x12000, scoped, tag = 'internal scratch']
  #allocation2 [shape = 'f32[16,128]{1,0:T(8,128)}', space=vmem, size = 0x2000, scoped, tag = 'scratch operand']
  #allocation3 [shape = 's32[1]{0}', space=sflag, size = 0x4, scoped, tag = 'scoped memory for _decode_impl.1']
  #allocation4 [shape = 'u8[8192]{0}', space=smem, size = 0x2000, scoped, tag = 'prefetched SMEM operand 0']
  %s0 = inlined_call_operand.hbm [shape: s32[12,16], index: 0, kind: input, shape index: {}]
  %s1 = inlined_call_operand.hbm [shape: f32[16,128], index: 1, kind: input, shape index: {}]
  %s2 = inlined_call_operand.hbm [shape: f32[256,128], index: 2, kind: input, shape index: {}]
  %s3 = inlined_call_operand.hbm [shape: bf16[128,384], index: 3, kind: input, shape index: {}]
  %s4 = inlined_call_operand.hbm [shape: bf16[128,384], index: 4, kind: input, shape index: {}]
  %s5 = inlined_call_operand.vmem [shape: f32[1,384], index: 5, kind: input, shape index: {}]
  %s6 = inlined_call_operand.vmem [shape: f32[1,384], index: 6, kind: input, shape index: {}]
  %s7 = inlined_call_operand.hbm [shape: bf16[128,256], index: 7, kind: input, shape index: {}]
  %s8 = inlined_call_operand.vmem [shape: f32[1,256], index: 8, kind: input, shape index: {}]
  %s9 = inlined_call_operand.hbm [shape: f32[12,16,256], index: 9, kind: output, shape index: {0}]
  %s10 = inlined_call_operand.hbm [shape: f32[16,128], index: 10, kind: output, shape index: {1}]
  %11 = xla_tuple %s9, %s10
  %s12 = sld [smem:[#allocation0]]
  $region97: #{_decode_impl.1} parent=0
    _
  %s14 = ssub.s32 1, %s12
  %s15 = scalar_select 0, %s14, %s12
  %17 = dma.hbm_to_smem %s0, 256, [#allocation4], [#allocation3]
  %18 = dma.done [#allocation3], 256
  %19 = sfence
  $region1: #{_decode_impl.1} parent=0
    #allocation5 [shape = 'u8[8192]{0}', space=vmem, size = 0x2000, scoped, tag = 'input window, operand 1, single buffered']
    #allocation6 [shape = 's32[2]{0}', space=sflag, size = 0x8, scoped, tag = 'scoped memory for _decode_impl.1']
    #allocation7 [shape = 's32[2]{0}', space=sflag, size = 0x8, scoped, tag = 'scoped memory for _decode_impl.1']
    #allocation8 [shape = 'u8[131072]{0}', space=vmem, size = 0x20000, scoped, tag = 'input window, operand 2, single buffered']
    #allocation9 [shape = 's32[1]{0}', space=sflag, size = 0x4, scoped, tag = 'scoped memory for _decode_impl.1']
    #allocation10 [shape = 'u8[98304]{0}', space=vmem, size = 0x18000, scoped, tag = 'input window, operand 3, single buffered']
    #allocation11 [shape = 'u8[98304]{0}', space=vmem, size = 0x18000, scoped, tag = 'input window, operand 4, single buffered']
    #allocation12 [shape = 's32[1]{0}', space=sflag, size = 0x4, scoped, tag = 'scoped memory for _decode_impl.1']
    #allocation13 [shape = 'u8[65536]{0}', space=vmem, size = 0x10000, scoped, tag = 'input window, operand 7, single buffered']
    #allocation14 [shape = 'u8[32768]{0}', space=vmem, size = 0x8000, scoped, tag = 'output window, operand 0']
    #allocation15 [shape = 'u8[8192]{0}', space=vmem, size = 0x2000, scoped, tag = 'output window, operand 1, single buffered']
    #allocation16 [shape = 's32[1]{0}', space=sflag, size = 0x4, scoped, tag = 'scoped memory for _decode_impl.1']
    %20 = vsyncpa [#allocation6], 0
    %21 = vsyncpa [#allocation9], 0
    %22 = vsyncpa [#allocation12], 0
    %23 = vsyncpa [#allocation7], 0
    %s24 = scalar_lea.sflag [#allocation7], 1
    %25 = vsyncpa %s24, 0
    %26 = vsyncpa [#allocation16], 0
    loop: start=0, step=1, limit=14
    $region2: #{_decode_impl.1} parent=1 // loop_pre_header
      _
    $region3: #{_decode_impl.1} parent=1 // loop_header
      %s28 = sphi 0, %s32
      %p29 = scmp.ge.s32.totalorder %s28, 14
      %s36 = sphi 0, %s36
      %s38 = sphi 0, %s36
      %s39 = sphi 0, %s38
      %s53 = sphi 0, %s39
      %s57 = sphi 0, %s57
      %s59 = sphi 0, %s57
      %s60 = sphi 0, %s59
      %s74 = sphi 0, %s60
      %s78 = sphi 0, %s78
      %s80 = sphi 0, %s78
      %s81 = sphi 0, %s80
      %s95 = sphi 0, %s81
      %s99 = sphi 0, %s99
      %s101 = sphi 0, %s99
      %s102 = sphi 0, %s101
      %s116 = sphi 0, %s102
      %s120 = sphi 0, %s120
      %s122 = sphi 0, %s120
      %s123 = sphi 0, %s122
      %s137 = sphi 0, %s123
      %s141 = sphi 0, %s141
      %s143 = sphi 0, %s141
      %s144 = sphi 0, %s143
      %s158 = sphi 0, %s144
      %s162 = sphi 0, %s162
      %s164 = sphi 0, %s162
      %s165 = sphi 0, %s164
      %s179 = sphi 0, %s165
      %s183 = sphi 0, %s183
      %s185 = sphi 0, %s183
      %s186 = sphi 0, %s185
      %s200 = sphi 0, %s186
      %s206 = sphi 0, %s208
      %s209 = sphi 0, %s206
      %s210 = sphi 0, %s209
      %s226 = sphi 0, %s210
      %s230 = sphi 0, %s230
      %s232 = sphi 0, %s230
      %s233 = sphi 0, %s232
      %s247 = sphi 0, %s233
    $region4: #{_decode_impl.1} parent=1 // loop_header_branch
      %31 = sbr.rel (%p29) target = $region8
    $region5: #{_decode_impl.1} parent=1 // loop_body
      %s33 = ssub.s32 %s28, 1
      %s34 = ssub.s32 %s28, 2
      %s35 = sadd.s32 %s28, 1
      %s37 = sadd.s32 %s36, 1
      %p40 = scmp.eq.s32.totalorder %s28, 11
      %p41 = scmp.ne.s32.totalorder %s36, %s38
      %p42 = scmp.eq.s32.totalorder %s28, 0
      %p43 = por %p41, %p42
      %p44 = scmp.ne.s32.totalorder %s36, %s38
      %p45 = scmp.eq.s32.totalorder %s33, 11
      %p46 = por %p44, %p45
      %p47 = scmp.ne.s32.totalorder %s38, %s39
      %p48 = scmp.eq.s32.totalorder %s33, 0
      %p49 = por %p47, %p48
      %p50 = scmp.ne.s32.totalorder %s38, %s39
      %p51 = scmp.eq.s32.totalorder %s34, 11
      %p52 = por %p50, %p51
      %p54 = scmp.ne.s32.totalorder %s39, %s53
      %p55 = scmp.eq.s32.totalorder %s34, 0
      %p56 = por %p54, %p55
      %s58 = sadd.s32 %s57, 1
      %p61 = scmp.eq.s32.totalorder %s28, 11
      %p62 = scmp.ne.s32.totalorder %s57, %s59
      %p63 = scmp.eq.s32.totalorder %s28, 0
      %p64 = por %p62, %p63
      %p65 = scmp.ne.s32.totalorder %s57, %s59
      %p66 = scmp.eq.s32.totalorder %s33, 11
      %p67 = por %p65, %p66
      %p68 = scmp.ne.s32.totalorder %s59, %s60
      %p69 = scmp.eq.s32.totalorder %s33, 0
      %p70 = por %p68, %p69
      %p71 = scmp.ne.s32.totalorder %s59, %s60
      %p72 = scmp.eq.s32.totalorder %s34, 11
      %p73 = por %p71, %p72
      %p75 = scmp.ne.s32.totalorder %s60, %s74
      %p76 = scmp.eq.s32.totalorder %s34, 0
      %p77 = por %p75, %p76
      %s79 = sadd.s32 %s78, 1
      %p82 = scmp.eq.s32.totalorder %s28, 11
      %p83 = scmp.ne.s32.totalorder %s78, %s80
      %p84 = scmp.eq.s32.totalorder %s28, 0
      %p85 = por %p83, %p84
      %p86 = scmp.ne.s32.totalorder %s78, %s80
      %p87 = scmp.eq.s32.totalorder %s33, 11
      %p88 = por %p86, %p87
      %p89 = scmp.ne.s32.totalorder %s80, %s81
      %p90 = scmp.eq.s32.totalorder %s33, 0
      %p91 = por %p89, %p90
      %p92 = scmp.ne.s32.totalorder %s80, %s81
      %p93 = scmp.eq.s32.totalorder %s34, 11
      %p94 = por %p92, %p93
      %p96 = scmp.ne.s32.totalorder %s81, %s95
      %p97 = scmp.eq.s32.totalorder %s34, 0
      %p98 = por %p96, %p97
      %s100 = sadd.s32 %s99, 1
      %p103 = scmp.eq.s32.totalorder %s28, 11
      %p104 = scmp.ne.s32.totalorder %s99, %s101
      %p105 = scmp.eq.s32.totalorder %s28, 0
      %p106 = por %p104, %p105
      %p107 = scmp.ne.s32.totalorder %s99, %s101
      %p108 = scmp.eq.s32.totalorder %s33, 11
      %p109 = por %p107, %p108
      %p110 = scmp.ne.s32.totalorder %s101, %s102
      %p111 = scmp.eq.s32.totalorder %s33, 0
      %p112 = por %p110, %p111
      %p113 = scmp.ne.s32.totalorder %s101, %s102
      %p114 = scmp.eq.s32.totalorder %s34, 11
      %p115 = por %p113, %p114
      %p117 = scmp.ne.s32.totalorder %s102, %s116
      %p118 = scmp.eq.s32.totalorder %s34, 0
      %p119 = por %p117, %p118
      %s121 = sadd.s32 %s120, 1
      %p124 = scmp.eq.s32.totalorder %s28, 11
      %p125 = scmp.ne.s32.totalorder %s120, %s122
      %p126 = scmp.eq.s32.totalorder %s28, 0
      %p127 = por %p125, %p126
      %p128 = scmp.ne.s32.totalorder %s120, %s122
      %p129 = scmp.eq.s32.totalorder %s33, 11
      %p130 = por %p128, %p129
      %p131 = scmp.ne.s32.totalorder %s122, %s123
      %p132 = scmp.eq.s32.totalorder %s33, 0
      %p133 = por %p131, %p132
      %p134 = scmp.ne.s32.totalorder %s122, %s123
      %p135 = scmp.eq.s32.totalorder %s34, 11
      %p136 = por %p134, %p135
      %p138 = scmp.ne.s32.totalorder %s123, %s137
      %p139 = scmp.eq.s32.totalorder %s34, 0
      %p140 = por %p138, %p139
      %s142 = sadd.s32 %s141, 1
      %p145 = scmp.eq.s32.totalorder %s28, 11
      %p146 = scmp.ne.s32.totalorder %s141, %s143
      %p147 = scmp.eq.s32.totalorder %s28, 0
      %p148 = por %p146, %p147
      %p149 = scmp.ne.s32.totalorder %s141, %s143
      %p150 = scmp.eq.s32.totalorder %s33, 11
      %p151 = por %p149, %p150
      %p152 = scmp.ne.s32.totalorder %s143, %s144
      %p153 = scmp.eq.s32.totalorder %s33, 0
      %p154 = por %p152, %p153
      %p155 = scmp.ne.s32.totalorder %s143, %s144
      %p156 = scmp.eq.s32.totalorder %s34, 11
      %p157 = por %p155, %p156
      %p159 = scmp.ne.s32.totalorder %s144, %s158
      %p160 = scmp.eq.s32.totalorder %s34, 0
      %p161 = por %p159, %p160
      %s163 = sadd.s32 %s162, 1
      %p166 = scmp.eq.s32.totalorder %s28, 11
      %p167 = scmp.ne.s32.totalorder %s162, %s164
      %p168 = scmp.eq.s32.totalorder %s28, 0
      %p169 = por %p167, %p168
      %p170 = scmp.ne.s32.totalorder %s162, %s164
      %p171 = scmp.eq.s32.totalorder %s33, 11
      %p172 = por %p170, %p171
      %p173 = scmp.ne.s32.totalorder %s164, %s165
      %p174 = scmp.eq.s32.totalorder %s33, 0
      %p175 = por %p173, %p174
      %p176 = scmp.ne.s32.totalorder %s164, %s165
      %p177 = scmp.eq.s32.totalorder %s34, 11
      %p178 = por %p176, %p177
      %p180 = scmp.ne.s32.totalorder %s165, %s179
      %p181 = scmp.eq.s32.totalorder %s34, 0
      %p182 = por %p180, %p181
      %s184 = sadd.s32 %s183, 1
      %p187 = scmp.eq.s32.totalorder %s28, 11
      %p188 = scmp.ne.s32.totalorder %s183, %s185
      %p189 = scmp.eq.s32.totalorder %s28, 0
      %p190 = por %p188, %p189
      %p191 = scmp.ne.s32.totalorder %s183, %s185
      %p192 = scmp.eq.s32.totalorder %s33, 11
      %p193 = por %p191, %p192
      %p194 = scmp.ne.s32.totalorder %s185, %s186
      %p195 = scmp.eq.s32.totalorder %s33, 0
      %p196 = por %p194, %p195
      %p197 = scmp.ne.s32.totalorder %s185, %s186
      %p198 = scmp.eq.s32.totalorder %s34, 11
      %p199 = por %p197, %p198
      %p201 = scmp.ne.s32.totalorder %s186, %s200
      %p202 = scmp.eq.s32.totalorder %s34, 0
      %p203 = por %p201, %p202
      %s204 = ssub.s32 %s28, %s35
      %p205 = scmp.eq.s32.totalorder %s204, 0
      %s207 = sadd.s32 %s206, 1
      %s208 = scalar_select %p205, %s206, %s207
      %p211 = pneg %p205
      %p212 = scmp.eq.s32.totalorder %s28, 11
      %p213 = por %p211, %p212
      %p214 = scmp.ne.s32.totalorder %s206, %s209
      %p215 = scmp.eq.s32.totalorder %s28, 0
      %p216 = por %p214, %p215
      %p217 = scmp.ne.s32.totalorder %s206, %s209
      %p218 = scmp.eq.s32.totalorder %s33, 11
      %p219 = por %p217, %p218
      %p220 = scmp.ne.s32.totalorder %s209, %s210
      %p221 = scmp.eq.s32.totalorder %s33, 0
      %p222 = por %p220, %p221
      %p223 = scmp.ne.s32.totalorder %s209, %s210
      %p224 = scmp.eq.s32.totalorder %s34, 11
      %p225 = por %p223, %p224
      %p227 = scmp.ne.s32.totalorder %s210, %s226
      %p228 = scmp.eq.s32.totalorder %s34, 0
      %p229 = por %p227, %p228
      %s231 = sadd.s32 %s230, 1
      %p234 = scmp.eq.s32.totalorder %s28, 11
      %p235 = scmp.ne.s32.totalorder %s230, %s232
      %p236 = scmp.eq.s32.totalorder %s28, 0
      %p237 = por %p235, %p236
      %p238 = scmp.ne.s32.totalorder %s230, %s232
      %p239 = scmp.eq.s32.totalorder %s33, 11
      %p240 = por %p238, %p239
      %p241 = scmp.ne.s32.totalorder %s232, %s233
      %p242 = scmp.eq.s32.totalorder %s33, 0
      %p243 = por %p241, %p242
      %p244 = scmp.ne.s32.totalorder %s232, %s233
      %p245 = scmp.eq.s32.totalorder %s34, 11
      %p246 = por %p244, %p245
      %p248 = scmp.ne.s32.totalorder %s233, %s247
      %p249 = scmp.eq.s32.totalorder %s34, 0
      %p250 = por %p248, %p249
      %p251 = scmp.le.s32.totalorder 1, %s28
      %p252 = scmp.lt.s32.totalorder %s28, 13
      %p253 = pnand %p251, %p252
      %p254 = pneg %p253
      // Predicated region
      $region9: #{_decode_impl.1} parent=5 // pred_check
        _
      $region10: #{_decode_impl.1} parent=5 // pred_check_branch
        %256 = sbr.rel (%p253) target = $region12
      $region11: #{_decode_impl.1} parent=5 // pred_region
        %s257 = ssub.s32 %s28, 1
        // Predicated region
        $region13: #{_decode_impl.1} parent=11 // pred_check
          %p258 = pneg %p49
        $region14: #{_decode_impl.1} parent=11 // pred_check_branch
          %260 = sbr.rel (%p258) target = $region16
        $region15: #{_decode_impl.1} parent=11 // pred_region
          %s262 = ssub.s32 256, 256
          %263 = vsyncadd [#allocation6], %s262
          %s264 = sshll.u32 [#allocation5], 4
          %s265 = int_to_ptr.vmem [resolvable:$true] %s264
          %270 = dma.hbm_to_vmem [thread:$0]  %s1, 256, %s265, [#allocation6], 128, 128, 8
        $region16: #{_decode_impl.1} parent=11 // pred_fallthru
          _
        // Predicated region
        $region17: #{_decode_impl.1} parent=11 // pred_check
          %p271 = pneg %p70
        $region18: #{_decode_impl.1} parent=11 // pred_check_branch
          %273 = sbr.rel (%p271) target = $region20
        $region19: #{_decode_impl.1} parent=11 // pred_region
          %s275 = ssub.s32 4096, 4096
          %276 = vsyncadd [#allocation9], %s275
          %s277 = sshll.u32 [#allocation8], 4
          %s278 = int_to_ptr.vmem [resolvable:$true] %s277
          %283 = dma.hbm_to_vmem [thread:$0]  %s2, 4096, %s278, [#allocation9], 128, 128, 8
        $region20: #{_decode_impl.1} parent=11 // pred_fallthru
          _
        // Predicated region
        $region21: #{_decode_impl.1} parent=11 // pred_check
          %p284 = pneg %p91
        $region22: #{_decode_impl.1} parent=11 // pred_check_branch
          %286 = sbr.rel (%p284) target = $region24
        $region23: #{_decode_impl.1} parent=11 // pred_region
          %s288 = ssub.s32 3072, 3072
          %289 = vsyncadd [#allocation9], %s288
          %s290 = sshll.u32 [#allocation10], 4
          %s291 = int_to_ptr.vmem [resolvable:$true] %s290
          %296 = dma.hbm_to_vmem [thread:$0]  %s3, 3072, %s291, [#allocation9], 192, 192, 12
        $region24: #{_decode_impl.1} parent=11 // pred_fallthru
          _
        // Predicated region
        $region25: #{_decode_impl.1} parent=11 // pred_check
          %p297 = pneg %p112
        $region26: #{_decode_impl.1} parent=11 // pred_check_branch
          %299 = sbr.rel (%p297) target = $region28
        $region27: #{_decode_impl.1} parent=11 // pred_region
          %s301 = ssub.s32 3072, 3072
          %302 = vsyncadd [#allocation12], %s301
          %s303 = sshll.u32 [#allocation11], 4
          %s304 = int_to_ptr.vmem [resolvable:$true] %s303
          %309 = dma.hbm_to_vmem [thread:$0]  %s4, 3072, %s304, [#allocation12], 192, 192, 12
        $region28: #{_decode_impl.1} parent=11 // pred_fallthru
          _
        // Predicated region
        $region29: #{_decode_impl.1} parent=11 // pred_check
          %p310 = pneg %p133
        $region30: #{_decode_impl.1} parent=11 // pred_check_branch
          %312 = sbr.rel (%p310) target = $region32
        $region31: #{_decode_impl.1} parent=11 // pred_region
          _
        $region32: #{_decode_impl.1} parent=11 // pred_fallthru
          _
        // Predicated region
        $region33: #{_decode_impl.1} parent=11 // pred_check
          %p313 = pneg %p154
        $region34: #{_decode_impl.1} parent=11 // pred_check_branch
          %315 = sbr.rel (%p313) target = $region36
        $region35: #{_decode_impl.1} parent=11 // pred_region
          _
        $region36: #{_decode_impl.1} parent=11 // pred_fallthru
          _
        // Predicated region
        $region37: #{_decode_impl.1} parent=11 // pred_check
          %p316 = pneg %p175
        $region38: #{_decode_impl.1} parent=11 // pred_check_branch
          %318 = sbr.rel (%p316) target = $region40
        $region39: #{_decode_impl.1} parent=11 // pred_region
          %s320 = ssub.s32 2048, 2048
          %321 = vsyncadd [#allocation12], %s320
          %s322 = sshll.u32 [#allocation13], 4
          %s323 = int_to_ptr.vmem [resolvable:$true] %s322
          %328 = dma.hbm_to_vmem [thread:$0]  %s7, 2048, %s323, [#allocation12], 128, 128, 8
        $region40: #{_decode_impl.1} parent=11 // pred_fallthru
          _
        // Predicated region
        $region41: #{_decode_impl.1} parent=11 // pred_check
          %p329 = pneg %p196
        $region42: #{_decode_impl.1} parent=11 // pred_check_branch
          %331 = sbr.rel (%p329) target = $region44
        $region43: #{_decode_impl.1} parent=11 // pred_region
          _
        $region44: #{_decode_impl.1} parent=11 // pred_fallthru
          _
      $region12: #{_decode_impl.1} parent=5 // pred_fallthru
        _
      %p332 = scmp.lt.s32.totalorder %s28, 12
      // Predicated region
      $region45: #{_decode_impl.1} parent=5 // pred_check
        %p333 = pneg %p332
      $region46: #{_decode_impl.1} parent=5 // pred_check_branch
        %335 = sbr.rel (%p333) target = $region48
      $region47: #{_decode_impl.1} parent=5 // pred_region
        _
      $region48: #{_decode_impl.1} parent=5 // pred_fallthru
        _
      %p336 = scmp.le.s32.totalorder 1, %s28
      %p337 = scmp.lt.s32.totalorder %s28, 13
      %p338 = pnand %p336, %p337
      %p339 = pneg %p338
      // Predicated region
      $region49: #{_decode_impl.1} parent=5 // pred_check
        _
      $region50: #{_decode_impl.1} parent=5 // pred_check_branch
        %341 = sbr.rel (%p338) target = $region52
      $region51: #{_decode_impl.1} parent=5 // pred_region
        %s342 = ssub.s32 %s28, 1
        // Predicated region
        $region53: #{_decode_impl.1} parent=51 // pred_check
          %p343 = pneg %p49
        $region54: #{_decode_impl.1} parent=51 // pred_check_branch
          %345 = sbr.rel (%p343) target = $region56
        $region55: #{_decode_impl.1} parent=51 // pred_region
          %346 = dma.done [#allocation6], 256
        $region56: #{_decode_impl.1} parent=51 // pred_fallthru
          _
        // Predicated region
        $region57: #{_decode_impl.1} parent=51 // pred_check
          %p347 = pneg %p70
        $region58: #{_decode_impl.1} parent=51 // pred_check_branch
          %349 = sbr.rel (%p347) target = $region60
        $region59: #{_decode_impl.1} parent=51 // pred_region
          %350 = dma.done [#allocation9], 4096
        $region60: #{_decode_impl.1} parent=51 // pred_fallthru
          _
        // Predicated region
        $region61: #{_decode_impl.1} parent=51 // pred_check
          %p351 = pneg %p91
        $region62: #{_decode_impl.1} parent=51 // pred_check_branch
          %353 = sbr.rel (%p351) target = $region64
        $region63: #{_decode_impl.1} parent=51 // pred_region
          %354 = dma.done [#allocation9], 3072
        $region64: #{_decode_impl.1} parent=51 // pred_fallthru
          _
        // Predicated region
        $region65: #{_decode_impl.1} parent=51 // pred_check
          %p355 = pneg %p112
        $region66: #{_decode_impl.1} parent=51 // pred_check_branch
          %357 = sbr.rel (%p355) target = $region68
        $region67: #{_decode_impl.1} parent=51 // pred_region
          %358 = dma.done [#allocation12], 3072
        $region68: #{_decode_impl.1} parent=51 // pred_fallthru
          _
        // Predicated region
        $region69: #{_decode_impl.1} parent=51 // pred_check
          %p359 = pneg %p175
        $region70: #{_decode_impl.1} parent=51 // pred_check_branch
          %361 = sbr.rel (%p359) target = $region72
        $region71: #{_decode_impl.1} parent=51 // pred_region
          %362 = dma.done [#allocation12], 2048
        $region72: #{_decode_impl.1} parent=51 // pred_fallthru
          _
        %p363 = pneg %p49
        %p364 = pneg %p46
        %p365 = pneg %p70
        %p366 = pneg %p67
        %p367 = pneg %p91
        %p368 = pneg %p88
        %p369 = pneg %p112
        %p370 = pneg %p109
        %p371 = pneg %p133
        %p372 = pneg %p130
        %p373 = pneg %p154
        %p374 = pneg %p151
        %p375 = pneg %p175
        %p376 = pneg %p172
        %p377 = pneg %p196
        %p378 = pneg %p193
        %p379 = pneg %p222
        %p380 = pneg %p219
        %s381 = sand.u32 %s209, 1
        %s382 = scalar_lea.sflag [#allocation7], %s381
        %s383 = sand.u32 %s209, 1
        %s384 = smul.addr %s383, 32
        %s385 = scalar_lea.vmem [#allocation14], %s384
        %p386 = pneg %p243
        %p387 = pneg %p240
        %p389 = scmp.eq.s32.totalorder %s33, 0
        // Predicated region
        $region73: #{_decode_impl.1} parent=51 // pred_check
          %p390 = pneg %p389
        $region74: #{_decode_impl.1} parent=51 // pred_check_branch
          %392 = sbr.rel (%p390) target = $region76
        $region75: #{_decode_impl.1} parent=51 // pred_region
          %v393 = vld [vmem:[#allocation5] sm:$0xff]
          %v394 = vld [vmem:[#allocation5 + $0x8] sm:$0xff]
          %395 = vst [vmem:[#allocation15] sm:$0xff] %v393
          %396 = vst [vmem:[#allocation15 + $0x8] sm:$0xff] %v394
        $region76: #{_decode_impl.1} parent=51 // pred_fallthru
          _
        %s397 = smul.u32 %s33, 128
        %s398 = sld [smem:[#allocation4 + %s397]]
        %s399 = scalar_lea.vmem [#allocation8], %s398
        %v400 = vld [vmem:[%s399] sm:$0x1]
        %401 = vst [vmem:[#allocation2] sm:$0x1] %v400
        %s402 = sadd.s32 %s397, 1
        %s403 = sld [smem:[#allocation4 + %s402]]
        %s404 = scalar_lea.vmem [#allocation8], %s403
        %v405 = vld [vmem:[%s404] sm:$0x1]
        %406 = vst [vmem:[#allocation2 + $0x1] sm:$0x1] %v405
        %s407 = sadd.s32 %s397, 2
        %s408 = sld [smem:[#allocation4 + %s407]]
        %s409 = scalar_lea.vmem [#allocation8], %s408
        %v410 = vld [vmem:[%s409] sm:$0x1]
        %411 = vst [vmem:[#allocation2 + $0x2] sm:$0x1] %v410
        %s412 = sadd.s32 %s397, 3
        %s413 = sld [smem:[#allocation4 + %s412]]
        %s414 = scalar_lea.vmem [#allocation8], %s413
        %v415 = vld [vmem:[%s414] sm:$0x1]
        %416 = vst [vmem:[#allocation2 + $0x3] sm:$0x1] %v415
        %s417 = sadd.s32 %s397, 4
        %s418 = sld [smem:[#allocation4 + %s417]]
        %s419 = scalar_lea.vmem [#allocation8], %s418
        %v420 = vld [vmem:[%s419] sm:$0x1]
        %421 = vst [vmem:[#allocation2 + $0x4] sm:$0x1] %v420
        %s422 = sadd.s32 %s397, 5
        %s423 = sld [smem:[#allocation4 + %s422]]
        %s424 = scalar_lea.vmem [#allocation8], %s423
        %v425 = vld [vmem:[%s424] sm:$0x1]
        %426 = vst [vmem:[#allocation2 + $0x5] sm:$0x1] %v425
        %s427 = sadd.s32 %s397, 6
        %s428 = sld [smem:[#allocation4 + %s427]]
        %s429 = scalar_lea.vmem [#allocation8], %s428
        %v430 = vld [vmem:[%s429] sm:$0x1]
        %431 = vst [vmem:[#allocation2 + $0x6] sm:$0x1] %v430
        %s432 = sadd.s32 %s397, 7
        %s433 = sld [smem:[#allocation4 + %s432]]
        %s434 = scalar_lea.vmem [#allocation8], %s433
        %v435 = vld [vmem:[%s434] sm:$0x1]
        %436 = vst [vmem:[#allocation2 + $0x7] sm:$0x1] %v435
        %s437 = sadd.s32 %s397, 8
        %s438 = sld [smem:[#allocation4 + %s437]]
        %s439 = scalar_lea.vmem [#allocation8], %s438
        %v440 = vld [vmem:[%s439] sm:$0x1]
        %441 = vst [vmem:[#allocation2 + $0x8] sm:$0x1] %v440
        %s442 = sadd.s32 %s397, 9
        %s443 = sld [smem:[#allocation4 + %s442]]
        %s444 = scalar_lea.vmem [#allocation8], %s443
        %v445 = vld [vmem:[%s444] sm:$0x1]
        %446 = vst [vmem:[#allocation2 + $0x9] sm:$0x1] %v445
        %s447 = sadd.s32 %s397, 10
        %s448 = sld [smem:[#allocation4 + %s447]]
        %s449 = scalar_lea.vmem [#allocation8], %s448
        %v450 = vld [vmem:[%s449] sm:$0x1]
        %451 = vst [vmem:[#allocation2 + $0xa] sm:$0x1] %v450
        %s452 = sadd.s32 %s397, 11
        %s453 = sld [smem:[#allocation4 + %s452]]
        %s454 = scalar_lea.vmem [#allocation8], %s453
        %v455 = vld [vmem:[%s454] sm:$0x1]
        %456 = vst [vmem:[#allocation2 + $0xb] sm:$0x1] %v455
        %s457 = sadd.s32 %s397, 12
        %s458 = sld [smem:[#allocation4 + %s457]]
        %s459 = scalar_lea.vmem [#allocation8], %s458
        %v460 = vld [vmem:[%s459] sm:$0x1]
        %461 = vst [vmem:[#allocation2 + $0xc] sm:$0x1] %v460
        %s462 = sadd.s32 %s397, 13
        %s463 = sld [smem:[#allocation4 + %s462]]
        %s464 = scalar_lea.vmem [#allocation8], %s463
        %v465 = vld [vmem:[%s464] sm:$0x1]
        %466 = vst [vmem:[#allocation2 + $0xd] sm:$0x1] %v465
        %s467 = sadd.s32 %s397, 14
        %s468 = sld [smem:[#allocation4 + %s467]]
        %s469 = scalar_lea.vmem [#allocation8], %s468
        %v470 = vld [vmem:[%s469] sm:$0x1]
        %471 = vst [vmem:[#allocation2 + $0xe] sm:$0x1] %v470
        %s472 = sadd.s32 %s397, 15
        %s473 = sld [smem:[#allocation4 + %s472]]
        %s474 = scalar_lea.vmem [#allocation8], %s473
        %v475 = vld [vmem:[%s474] sm:$0x1]
        %476 = vst [vmem:[#allocation2 + $0xf] sm:$0x1] %v475
        %v477 = vld [vmem:[#allocation2] sm:$0xff]
        %v478 = vld [vmem:[#allocation2 + $0x8] sm:$0xff]
        %v479 = vmax.f32 %v477, 0.0
        %v480 = vmax.f32 %v478, 0.0
        %v481 = vpack.c.bf16 %v480, %v479
        %v482 = vld [vmem:[#allocation15] sm:$0xff]
        %v483 = vld [vmem:[#allocation15 + $0x8] sm:$0xff]
        %v484 = vld [vmem:[#allocation10] sm:$0xff]
        %v485 = vld [vmem:[#allocation10 + $0x8] sm:$0xf]
        %v486 = vld [vmem:[#allocation10 + $0xc] sm:$0xff]
        %v487 = vld [vmem:[#allocation10 + $0x14] sm:$0xf]
        %v488 = vld [vmem:[#allocation10 + $0x18] sm:$0xff]
        %v489 = vld [vmem:[#allocation10 + $0x20] sm:$0xf]
        %v490 = vld [vmem:[#allocation10 + $0x24] sm:$0xff]
        %v491 = vld [vmem:[#allocation10 + $0x2c] sm:$0xf]
        %v492 = vld [vmem:[#allocation10 + $0x30] sm:$0xff]
        %v493 = vld [vmem:[#allocation10 + $0x38] sm:$0xf]
        %v494 = vld [vmem:[#allocation10 + $0x3c] sm:$0xff]
        %v495 = vld [vmem:[#allocation10 + $0x44] sm:$0xf]
        %v496 = vld [vmem:[#allocation10 + $0x48] sm:$0xff]
        %v497 = vld [vmem:[#allocation10 + $0x50] sm:$0xf]
        %v498 = vld [vmem:[#allocation10 + $0x54] sm:$0xff]
        %v499 = vld [vmem:[#allocation10 + $0x5c] sm:$0xf]
        %v500 = vld [vmem:[#allocation10 + $0x60] sm:$0xff]
        %v501 = vld [vmem:[#allocation10 + $0x68] sm:$0xf]
        %v502 = vld [vmem:[#allocation10 + $0x6c] sm:$0xff]
        %v503 = vld [vmem:[#allocation10 + $0x74] sm:$0xf]
        %v504 = vld [vmem:[#allocation10 + $0x78] sm:$0xff]
        %v505 = vld [vmem:[#allocation10 + $0x80] sm:$0xf]
        %v506 = vld [vmem:[#allocation10 + $0x84] sm:$0xff]
        %v507 = vld [vmem:[#allocation10 + $0x8c] sm:$0xf]
        %v508 = vld [vmem:[#allocation10 + $0x90] sm:$0xff]
        %v509 = vld [vmem:[#allocation10 + $0x98] sm:$0xf]
        %v510 = vld [vmem:[#allocation10 + $0x9c] sm:$0xff]
        %v511 = vld [vmem:[#allocation10 + $0xa4] sm:$0xf]
        %v512 = vld [vmem:[#allocation10 + $0xa8] sm:$0xff]
        %v513 = vld [vmem:[#allocation10 + $0xb0] sm:$0xf]
        %v514 = vld [vmem:[#allocation10 + $0xb4] sm:$0xff]
        %v515 = vld [vmem:[#allocation10 + $0xbc] sm:$0xf]
        %v516 = vld [vmem:[%s5] sm:$0x7]
        %v518 = vlaneseq
        %v519 = vshrl.u32 %v518, 7
        %v520 = vsub.s32 0, %v519
        %v521 = vrot.slane %v516, %v520
        %v522 = vlaneseq
        %v523 = vshrl.u32 %v522, 7
        %v524 = vsub.s32 1, %v523
        %v525 = vrot.slane %v516, %v524
        %v526 = vlaneseq
        %v527 = vshrl.u32 %v526, 7
        %v528 = vsub.s32 2, %v527
        %v529 = vrot.slane %v516, %v528
        %v565 = vunpack.c.l.b16 %v484
        %v566 = vunpack.c.h.b16 %v484
        %v567 = vunpack.c.l.b16 %v485
        %v568 = vunpack.c.l.b16 %v486
        %v569 = vunpack.c.h.b16 %v486
        %v570 = vunpack.c.l.b16 %v487
        %v571 = vunpack.c.l.b16 %v488
        %v572 = vunpack.c.h.b16 %v488
        %v573 = vunpack.c.l.b16 %v489
        %v574 = vunpack.c.l.b16 %v490
        %v575 = vunpack.c.h.b16 %v490
        %v576 = vunpack.c.l.b16 %v491
        %v577 = vunpack.c.l.b16 %v492
        %v578 = vunpack.c.h.b16 %v492
        %v579 = vunpack.c.l.b16 %v493
        %v580 = vunpack.c.l.b16 %v494
        %v581 = vunpack.c.h.b16 %v494
        %v582 = vunpack.c.l.b16 %v495
        %v583 = vunpack.c.l.b16 %v496
        %v584 = vunpack.c.h.b16 %v496
        %v585 = vunpack.c.l.b16 %v497
        %v586 = vunpack.c.l.b16 %v498
        %v587 = vunpack.c.h.b16 %v498
        %v588 = vunpack.c.l.b16 %v499
        %v589 = vunpack.c.l.b16 %v500
        %v590 = vunpack.c.h.b16 %v500
        %v591 = vunpack.c.l.b16 %v501
        %v592 = vunpack.c.l.b16 %v502
        %v593 = vunpack.c.h.b16 %v502
        %v594 = vunpack.c.l.b16 %v503
        %v595 = vunpack.c.l.b16 %v504
        %v596 = vunpack.c.h.b16 %v504
        %v597 = vunpack.c.l.b16 %v505
        %v598 = vunpack.c.l.b16 %v506
        %v599 = vunpack.c.h.b16 %v506
        %v600 = vunpack.c.l.b16 %v507
        %v601 = vunpack.c.l.b16 %v508
        %v602 = vunpack.c.h.b16 %v508
        %v603 = vunpack.c.l.b16 %v509
        %v604 = vunpack.c.l.b16 %v510
        %v605 = vunpack.c.h.b16 %v510
        %v606 = vunpack.c.l.b16 %v511
        %v607 = vunpack.c.l.b16 %v512
        %v608 = vunpack.c.h.b16 %v512
        %v609 = vunpack.c.l.b16 %v513
        %v610 = vunpack.c.l.b16 %v514
        %v611 = vunpack.c.h.b16 %v514
        %v612 = vunpack.c.l.b16 %v515
        %v613 = vpack.c.b16 %v568, %v565
        %v614 = vpack.c.b16 %v569, %v566
        %v615 = vpack.c.b16 %v570, %v567
        %v616 = vpack.c.b16 %v574, %v571
        %v617 = vpack.c.b16 %v575, %v572
        %v618 = vpack.c.b16 %v576, %v573
        %v619 = vpack.c.b16 %v580, %v577
        %v620 = vpack.c.b16 %v581, %v578
        %v621 = vpack.c.b16 %v582, %v579
        %v622 = vpack.c.b16 %v586, %v583
        %v623 = vpack.c.b16 %v587, %v584
        %v624 = vpack.c.b16 %v588, %v585
        %v625 = vpack.c.b16 %v592, %v589
        %v626 = vpack.c.b16 %v593, %v590
        %v627 = vpack.c.b16 %v594, %v591
        %v628 = vpack.c.b16 %v598, %v595
        %v629 = vpack.c.b16 %v599, %v596
        %v630 = vpack.c.b16 %v600, %v597
        %v631 = vpack.c.b16 %v604, %v601
        %v632 = vpack.c.b16 %v605, %v602
        %v633 = vpack.c.b16 %v606, %v603
        %v634 = vpack.c.b16 %v610, %v607
        %v635 = vpack.c.b16 %v611, %v608
        %v636 = vpack.c.b16 %v612, %v609
        %661 = vmatprep.subr.bf16.mxu0 %v614
        %662 = vmatpush1.bf16.msra.mxu0 %v613
        %663 = vmatprep.subr.bf16.mxu0 %v617
        %664 = vmatpush1.bf16.msra.mxu0 %v616
        %665 = vmatprep.subr.bf16.mxu0 %v620
        %666 = vmatpush1.bf16.msra.mxu0 %v619
        %667 = vmatprep.subr.bf16.mxu0 %v623
        %668 = vmatpush1.bf16.msra.mxu0 %v622
        %669 = vmatprep.subr.bf16.mxu0 %v626
        %670 = vmatpush1.bf16.msra.mxu0 %v625
        %671 = vmatprep.subr.bf16.mxu0 %v629
        %672 = vmatpush1.bf16.msra.mxu0 %v628
        %673 = vmatprep.subr.bf16.mxu0 %v632
        %674 = vmatpush1.bf16.msra.mxu0 %v631
        %675 = vmatprep.subr.bf16.mxu0 %v635
        %676 = vmatpush1.bf16.msra.mxu0 %v634
        %677 = vmatprep.subr.bf16.mxu0 0
        %678 = vmatpush1.bf16.msra.mxu0 0
        %679 = vmatprep.subr.bf16.mxu0 0
        %680 = vmatpush1.bf16.msra.mxu0 0
        %681 = vmatprep.subr.bf16.mxu0 0
        %682 = vmatpush1.bf16.msra.mxu0 0
        %683 = vmatprep.subr.bf16.mxu0 0
        %684 = vmatpush1.bf16.msra.mxu0 0
        %685 = vmatprep.subr.bf16.mxu0 0
        %686 = vmatpush1.bf16.msra.mxu0 0
        %687 = vmatprep.subr.bf16.mxu0 0
        %688 = vmatpush1.bf16.msra.mxu0 0
        %689 = vmatprep.subr.bf16.mxu0 0
        %690 = vmatpush1.bf16.msra.mxu0 0
        %691 = vmatprep.subr.bf16.mxu0 0
        %692 = vmatpush1.bf16.msra.mxu0 0
        %693 = vmatprep.mubr.bf16.mxu0 0
        %694 = vmatmul.mubr.bf16.gmra.mrb[0].mxu0 %v481
        %v695 = vpop.f32.mrb[0].mxu0
        %v696 = vadd.f32 %v521, %v695
        %v697 = vpop.f32.mrb[0].mxu0
        %v698 = vadd.f32 %v525, %v697
        %v699 = vpop.f32.mrb[0].mxu0
        %v700 = vadd.f32 %v521, %v699
        %v701 = vpop.f32.mrb[0].mxu0
        %v702 = vadd.f32 %v525, %v701
        %703 = vdwg.mxu0
        %704 = vmatprep.subr.bf16.mxu0 0
        %705 = vmatpush1.bf16.msra.mxu0 %v615
        %706 = vmatprep.subr.bf16.mxu0 0
        %707 = vmatpush1.bf16.msra.mxu0 %v618
        %708 = vmatprep.subr.bf16.mxu0 0
        %709 = vmatpush1.bf16.msra.mxu0 %v621
        %710 = vmatprep.subr.bf16.mxu0 0
        %711 = vmatpush1.bf16.msra.mxu0 %v624
        %712 = vmatprep.subr.bf16.mxu0 0
        %713 = vmatpush1.bf16.msra.mxu0 %v627
        %714 = vmatprep.subr.bf16.mxu0 0
        %715 = vmatpush1.bf16.msra.mxu0 %v630
        %716 = vmatprep.subr.bf16.mxu0 0
        %717 = vmatpush1.bf16.msra.mxu0 %v633
        %718 = vmatprep.subr.bf16.mxu0 0
        %719 = vmatpush1.bf16.msra.mxu0 %v636
        %720 = vmatprep.subr.bf16.mxu0 0
        %721 = vmatpush1.bf16.msra.mxu0 0
        %722 = vmatprep.subr.bf16.mxu0 0
        %723 = vmatpush1.bf16.msra.mxu0 0
        %724 = vmatprep.subr.bf16.mxu0 0
        %725 = vmatpush1.bf16.msra.mxu0 0
        %726 = vmatprep.subr.bf16.mxu0 0
        %727 = vmatpush1.bf16.msra.mxu0 0
        %728 = vmatprep.subr.bf16.mxu0 0
        %729 = vmatpush1.bf16.msra.mxu0 0
        %730 = vmatprep.subr.bf16.mxu0 0
        %731 = vmatpush1.bf16.msra.mxu0 0
        %732 = vmatprep.subr.bf16.mxu0 0
        %733 = vmatpush1.bf16.msra.mxu0 0
        %734 = vmatprep.subr.bf16.mxu0 0
        %735 = vmatpush1.bf16.msra.mxu0 0
        %736 = vmatprep.mubr.bf16.mxu0 0
        %737 = vmatmul.mubr.bf16.gmra.mrb[0].mxu0 %v481
        %v738 = vpop.f32.mrb[0].mxu0
        %v739 = vadd.f32 %v529, %v738
        %v740 = vpop.f32.mrb[0].mxu0
        %v741 = vpop.f32.mrb[0].mxu0
        %v742 = vadd.f32 %v529, %v741
        %v743 = vpop.f32.mrb[0].mxu0
        %744 = vdwg.mxu0
        %v745 = vpack.c.bf16 %v483, %v482
        %v746 = vld [vmem:[#allocation11] sm:$0xff]
        %v747 = vld [vmem:[#allocation11 + $0x8] sm:$0xf]
        %v748 = vld [vmem:[#allocation11 + $0xc] sm:$0xff]
        %v749 = vld [vmem:[#allocation11 + $0x14] sm:$0xf]
        %v750 = vld [vmem:[#allocation11 + $0x18] sm:$0xff]
        %v751 = vld [vmem:[#allocation11 + $0x20] sm:$0xf]
        %v752 = vld [vmem:[#allocation11 + $0x24] sm:$0xff]
        %v753 = vld [vmem:[#allocation11 + $0x2c] sm:$0xf]
        %v754 = vld [vmem:[#allocation11 + $0x30] sm:$0xff]
        %v755 = vld [vmem:[#allocation11 + $0x38] sm:$0xf]
        %v756 = vld [vmem:[#allocation11 + $0x3c] sm:$0xff]
        %v757 = vld [vmem:[#allocation11 + $0x44] sm:$0xf]
        %v758 = vld [vmem:[#allocation11 + $0x48] sm:$0xff]
        %v759 = vld [vmem:[#allocation11 + $0x50] sm:$0xf]
        %v760 = vld [vmem:[#allocation11 + $0x54] sm:$0xff]
        %v761 = vld [vmem:[#allocation11 + $0x5c] sm:$0xf]
        %v762 = vld [vmem:[#allocation11 + $0x60] sm:$0xff]
        %v763 = vld [vmem:[#allocation11 + $0x68] sm:$0xf]
        %v764 = vld [vmem:[#allocation11 + $0x6c] sm:$0xff]
        %v765 = vld [vmem:[#allocation11 + $0x74] sm:$0xf]
        %v766 = vld [vmem:[#allocation11 + $0x78] sm:$0xff]
        %v767 = vld [vmem:[#allocation11 + $0x80] sm:$0xf]
        %v768 = vld [vmem:[#allocation11 + $0x84] sm:$0xff]
        %v769 = vld [vmem:[#allocation11 + $0x8c] sm:$0xf]
        %v770 = vld [vmem:[#allocation11 + $0x90] sm:$0xff]
        %v771 = vld [vmem:[#allocation11 + $0x98] sm:$0xf]
        %v772 = vld [vmem:[#allocation11 + $0x9c] sm:$0xff]
        %v773 = vld [vmem:[#allocation11 + $0xa4] sm:$0xf]
        %v774 = vld [vmem:[#allocation11 + $0xa8] sm:$0xff]
        %v775 = vld [vmem:[#allocation11 + $0xb0] sm:$0xf]
        %v776 = vld [vmem:[#allocation11 + $0xb4] sm:$0xff]
        %v777 = vld [vmem:[#allocation11 + $0xbc] sm:$0xf]
        %v778 = vld [vmem:[%s6] sm:$0x7]
        %v780 = vlaneseq
        %v781 = vshrl.u32 %v780, 7
        %v782 = vsub.s32 0, %v781
        %v783 = vrot.slane %v778, %v782
        %v784 = vlaneseq
        %v785 = vshrl.u32 %v784, 7
        %v786 = vsub.s32 1, %v785
        %v787 = vrot.slane %v778, %v786
        %v788 = vlaneseq
        %v789 = vshrl.u32 %v788, 7
        %v790 = vsub.s32 2, %v789
        %v791 = vrot.slane %v778, %v790
        %v827 = vunpack.c.l.b16 %v746
        %v828 = vunpack.c.h.b16 %v746
        %v829 = vunpack.c.l.b16 %v747
        %v830 = vunpack.c.l.b16 %v748
        %v831 = vunpack.c.h.b16 %v748
        %v832 = vunpack.c.l.b16 %v749
        %v833 = vunpack.c.l.b16 %v750
        %v834 = vunpack.c.h.b16 %v750
        %v835 = vunpack.c.l.b16 %v751
        %v836 = vunpack.c.l.b16 %v752
        %v837 = vunpack.c.h.b16 %v752
        %v838 = vunpack.c.l.b16 %v753
        %v839 = vunpack.c.l.b16 %v754
        %v840 = vunpack.c.h.b16 %v754
        %v841 = vunpack.c.l.b16 %v755
        %v842 = vunpack.c.l.b16 %v756
        %v843 = vunpack.c.h.b16 %v756
        %v844 = vunpack.c.l.b16 %v757
        %v845 = vunpack.c.l.b16 %v758
        %v846 = vunpack.c.h.b16 %v758
        %v847 = vunpack.c.l.b16 %v759
        %v848 = vunpack.c.l.b16 %v760
        %v849 = vunpack.c.h.b16 %v760
        %v850 = vunpack.c.l.b16 %v761
        %v851 = vunpack.c.l.b16 %v762
        %v852 = vunpack.c.h.b16 %v762
        %v853 = vunpack.c.l.b16 %v763
        %v854 = vunpack.c.l.b16 %v764
        %v855 = vunpack.c.h.b16 %v764
        %v856 = vunpack.c.l.b16 %v765
        %v857 = vunpack.c.l.b16 %v766
        %v858 = vunpack.c.h.b16 %v766
        %v859 = vunpack.c.l.b16 %v767
        %v860 = vunpack.c.l.b16 %v768
        %v861 = vunpack.c.h.b16 %v768
        %v862 = vunpack.c.l.b16 %v769
        %v863 = vunpack.c.l.b16 %v770
        %v864 = vunpack.c.h.b16 %v770
        %v865 = vunpack.c.l.b16 %v771
        %v866 = vunpack.c.l.b16 %v772
        %v867 = vunpack.c.h.b16 %v772
        %v868 = vunpack.c.l.b16 %v773
        %v869 = vunpack.c.l.b16 %v774
        %v870 = vunpack.c.h.b16 %v774
        %v871 = vunpack.c.l.b16 %v775
        %v872 = vunpack.c.l.b16 %v776
        %v873 = vunpack.c.h.b16 %v776
        %v874 = vunpack.c.l.b16 %v777
        %v875 = vpack.c.b16 %v830, %v827
        %v876 = vpack.c.b16 %v831, %v828
        %v877 = vpack.c.b16 %v832, %v829
        %v878 = vpack.c.b16 %v836, %v833
        %v879 = vpack.c.b16 %v837, %v834
        %v880 = vpack.c.b16 %v838, %v835
        %v881 = vpack.c.b16 %v842, %v839
        %v882 = vpack.c.b16 %v843, %v840
        %v883 = vpack.c.b16 %v844, %v841
        %v884 = vpack.c.b16 %v848, %v845
        %v885 = vpack.c.b16 %v849, %v846
        %v886 = vpack.c.b16 %v850, %v847
        %v887 = vpack.c.b16 %v854, %v851
        %v888 = vpack.c.b16 %v855, %v852
        %v889 = vpack.c.b16 %v856, %v853
        %v890 = vpack.c.b16 %v860, %v857
        %v891 = vpack.c.b16 %v861, %v858
        %v892 = vpack.c.b16 %v862, %v859
        %v893 = vpack.c.b16 %v866, %v863
        %v894 = vpack.c.b16 %v867, %v864
        %v895 = vpack.c.b16 %v868, %v865
        %v896 = vpack.c.b16 %v872, %v869
        %v897 = vpack.c.b16 %v873, %v870
        %v898 = vpack.c.b16 %v874, %v871
        %923 = vmatprep.subr.bf16.mxu0 %v876
        %924 = vmatpush1.bf16.msra.mxu0 %v875
        %925 = vmatprep.subr.bf16.mxu0 %v879
        %926 = vmatpush1.bf16.msra.mxu0 %v878
        %927 = vmatprep.subr.bf16.mxu0 %v882
        %928 = vmatpush1.bf16.msra.mxu0 %v881
        %929 = vmatprep.subr.bf16.mxu0 %v885
        %930 = vmatpush1.bf16.msra.mxu0 %v884
        %931 = vmatprep.subr.bf16.mxu0 %v888
        %932 = vmatpush1.bf16.msra.mxu0 %v887
        %933 = vmatprep.subr.bf16.mxu0 %v891
        %934 = vmatpush1.bf16.msra.mxu0 %v890
        %935 = vmatprep.subr.bf16.mxu0 %v894
        %936 = vmatpush1.bf16.msra.mxu0 %v893
        %937 = vmatprep.subr.bf16.mxu0 %v897
        %938 = vmatpush1.bf16.msra.mxu0 %v896
        %939 = vmatprep.subr.bf16.mxu0 0
        %940 = vmatpush1.bf16.msra.mxu0 0
        %941 = vmatprep.subr.bf16.mxu0 0
        %942 = vmatpush1.bf16.msra.mxu0 0
        %943 = vmatprep.subr.bf16.mxu0 0
        %944 = vmatpush1.bf16.msra.mxu0 0
        %945 = vmatprep.subr.bf16.mxu0 0
        %946 = vmatpush1.bf16.msra.mxu0 0
        %947 = vmatprep.subr.bf16.mxu0 0
        %948 = vmatpush1.bf16.msra.mxu0 0
        %949 = vmatprep.subr.bf16.mxu0 0
        %950 = vmatpush1.bf16.msra.mxu0 0
        %951 = vmatprep.subr.bf16.mxu0 0
        %952 = vmatpush1.bf16.msra.mxu0 0
        %953 = vmatprep.subr.bf16.mxu0 0
        %954 = vmatpush1.bf16.msra.mxu0 0
        %955 = vmatprep.mubr.bf16.mxu0 0
        %956 = vmatmul.mubr.bf16.gmra.mrb[0].mxu0 %v745
        %v957 = vpop.f32.mrb[0].mxu0
        %v958 = vadd.f32 %v783, %v957
        %v959 = vpop.f32.mrb[0].mxu0
        %v960 = vadd.f32 %v787, %v959
        %v961 = vpop.f32.mrb[0].mxu0
        %v962 = vadd.f32 %v783, %v961
        %v963 = vpop.f32.mrb[0].mxu0
        %v964 = vadd.f32 %v787, %v963
        %965 = vdwg.mxu0
        %966 = vmatprep.subr.bf16.mxu0 0
        %967 = vmatpush1.bf16.msra.mxu0 %v877
        %968 = vmatprep.subr.bf16.mxu0 0
        %969 = vmatpush1.bf16.msra.mxu0 %v880
        %970 = vmatprep.subr.bf16.mxu0 0
        %971 = vmatpush1.bf16.msra.mxu0 %v883
        %972 = vmatprep.subr.bf16.mxu0 0
        %973 = vmatpush1.bf16.msra.mxu0 %v886
        %974 = vmatprep.subr.bf16.mxu0 0
        %975 = vmatpush1.bf16.msra.mxu0 %v889
        %976 = vmatprep.subr.bf16.mxu0 0
        %977 = vmatpush1.bf16.msra.mxu0 %v892
        %978 = vmatprep.subr.bf16.mxu0 0
        %979 = vmatpush1.bf16.msra.mxu0 %v895
        %980 = vmatprep.subr.bf16.mxu0 0
        %981 = vmatpush1.bf16.msra.mxu0 %v898
        %982 = vmatprep.subr.bf16.mxu0 0
        %983 = vmatpush1.bf16.msra.mxu0 0
        %984 = vmatprep.subr.bf16.mxu0 0
        %985 = vmatpush1.bf16.msra.mxu0 0
        %986 = vmatprep.subr.bf16.mxu0 0
        %987 = vmatpush1.bf16.msra.mxu0 0
        %988 = vmatprep.subr.bf16.mxu0 0
        %989 = vmatpush1.bf16.msra.mxu0 0
        %990 = vmatprep.subr.bf16.mxu0 0
        %991 = vmatpush1.bf16.msra.mxu0 0
        %992 = vmatprep.subr.bf16.mxu0 0
        %993 = vmatpush1.bf16.msra.mxu0 0
        %994 = vmatprep.subr.bf16.mxu0 0
        %995 = vmatpush1.bf16.msra.mxu0 0
        %996 = vmatprep.subr.bf16.mxu0 0
        %997 = vmatpush1.bf16.msra.mxu0 0
        %998 = vmatprep.mubr.bf16.mxu0 0
        %999 = vmatmul.mubr.bf16.gmra.mrb[0].mxu0 %v745
        %v1000 = vpop.f32.mrb[0].mxu0
        %v1001 = vadd.f32 %v791, %v1000
        %v1002 = vpop.f32.mrb[0].mxu0
        %v1003 = vpop.f32.mrb[0].mxu0
        %v1004 = vadd.f32 %v791, %v1003
        %v1005 = vpop.f32.mrb[0].mxu0
        %1006 = vdwg.mxu0
        %v1007 = vadd.f32 %v696, %v958
        %v1008 = vadd.f32 %v700, %v962
        %v1009 = vxor.u32 %v1007, 2147483648
        %v1010 = vxor.u32 %v1008, 2147483648
        %v1011 = vmul.f32 %v1009, 1.442695
        %v1012 = vpow.pop %v1011
        %v1013 = vmul.f32 %v1010, 1.442695
        %v1014 = vpow.pop %v1013
        %v1015 = vadd.f32 %v1012, 1.0
        %v1016 = vadd.f32 %v1014, 1.0
        %v1017 = vrcp.pop %v1015
        %v1018 = vmul.f32 1.0, %v1017
        %v1019 = vrcp.pop %v1016
        %v1020 = vmul.f32 1.0, %v1019
        %v1021 = vadd.f32 %v698, %v960
        %v1022 = vadd.f32 %v702, %v964
        %v1023 = vxor.u32 %v1021, 2147483648
        %v1024 = vxor.u32 %v1022, 2147483648
        %v1025 = vmul.f32 %v1023, 1.442695
        %v1026 = vpow.pop %v1025
        %v1027 = vmul.f32 %v1024, 1.442695
        %v1028 = vpow.pop %v1027
        %v1029 = vadd.f32 %v1026, 1.0
        %v1030 = vadd.f32 %v1028, 1.0
        %v1031 = vrcp.pop %v1029
        %v1032 = vmul.f32 1.0, %v1031
        %v1033 = vrcp.pop %v1030
        %v1034 = vmul.f32 1.0, %v1033
        %v1035 = vmul.f32 %v1018, %v1001
        %v1036 = vmul.f32 %v1020, %v1004
        %v1037 = vadd.f32 %v739, %v1035
        %v1038 = vadd.f32 %v742, %v1036
        %v1039 = vtanh.pop %v1037
        %v1040 = vtanh.pop %v1038
        %v1041 = vsub.f32 1.0, %v1032
        %v1042 = vsub.f32 1.0, %v1034
        %v1043 = vmul.f32 %v1041, %v1039
        %v1044 = vmul.f32 %v1042, %v1040
        %v1045 = vmul.f32 %v1032, %v482
        %v1046 = vmul.f32 %v1034, %v483
        %v1047 = vadd.f32 %v1043, %v1045
        %v1048 = vadd.f32 %v1044, %v1046
        %1049 = vst [vmem:[#allocation15] sm:$0xff] %v1047
        %1050 = vst [vmem:[#allocation15 + $0x8] sm:$0xff] %v1048
        %v1051 = vpack.c.bf16 %v1048, %v1047
        %v1052 = vld [vmem:[#allocation13] sm:$0xff]
        %v1053 = vld [vmem:[#allocation13 + $0x8] sm:$0xff]
        %v1054 = vld [vmem:[#allocation13 + $0x10] sm:$0xff]
        %v1055 = vld [vmem:[#allocation13 + $0x18] sm:$0xff]
        %v1056 = vld [vmem:[#allocation13 + $0x20] sm:$0xff]
        %v1057 = vld [vmem:[#allocation13 + $0x28] sm:$0xff]
        %v1058 = vld [vmem:[#allocation13 + $0x30] sm:$0xff]
        %v1059 = vld [vmem:[#allocation13 + $0x38] sm:$0xff]
        %v1060 = vld [vmem:[#allocation13 + $0x40] sm:$0xff]
        %v1061 = vld [vmem:[#allocation13 + $0x48] sm:$0xff]
        %v1062 = vld [vmem:[#allocation13 + $0x50] sm:$0xff]
        %v1063 = vld [vmem:[#allocation13 + $0x58] sm:$0xff]
        %v1064 = vld [vmem:[#allocation13 + $0x60] sm:$0xff]
        %v1065 = vld [vmem:[#allocation13 + $0x68] sm:$0xff]
        %v1066 = vld [vmem:[#allocation13 + $0x70] sm:$0xff]
        %v1067 = vld [vmem:[#allocation13 + $0x78] sm:$0xff]
        %v1068 = vld [vmem:[%s8] sm:$0x3]
        %v1070 = vlaneseq
        %v1071 = vshrl.u32 %v1070, 7
        %v1072 = vsub.s32 0, %v1071
        %v1073 = vrot.slane %v1068, %v1072
        %v1074 = vlaneseq
        %v1075 = vshrl.u32 %v1074, 7
        %v1076 = vsub.s32 1, %v1075
        %v1077 = vrot.slane %v1068, %v1076
        %v1096 = vunpack.c.l.b16 %v1052
        %v1097 = vunpack.c.h.b16 %v1052
        %v1098 = vunpack.c.l.b16 %v1053
        %v1099 = vunpack.c.h.b16 %v1053
        %v1100 = vunpack.c.l.b16 %v1054
        %v1101 = vunpack.c.h.b16 %v1054
        %v1102 = vunpack.c.l.b16 %v1055
        %v1103 = vunpack.c.h.b16 %v1055
        %v1104 = vunpack.c.l.b16 %v1056
        %v1105 = vunpack.c.h.b16 %v1056
        %v1106 = vunpack.c.l.b16 %v1057
        %v1107 = vunpack.c.h.b16 %v1057
        %v1108 = vunpack.c.l.b16 %v1058
        %v1109 = vunpack.c.h.b16 %v1058
        %v1110 = vunpack.c.l.b16 %v1059
        %v1111 = vunpack.c.h.b16 %v1059
        %v1112 = vunpack.c.l.b16 %v1060
        %v1113 = vunpack.c.h.b16 %v1060
        %v1114 = vunpack.c.l.b16 %v1061
        %v1115 = vunpack.c.h.b16 %v1061
        %v1116 = vunpack.c.l.b16 %v1062
        %v1117 = vunpack.c.h.b16 %v1062
        %v1118 = vunpack.c.l.b16 %v1063
        %v1119 = vunpack.c.h.b16 %v1063
        %v1120 = vunpack.c.l.b16 %v1064
        %v1121 = vunpack.c.h.b16 %v1064
        %v1122 = vunpack.c.l.b16 %v1065
        %v1123 = vunpack.c.h.b16 %v1065
        %v1124 = vunpack.c.l.b16 %v1066
        %v1125 = vunpack.c.h.b16 %v1066
        %v1126 = vunpack.c.l.b16 %v1067
        %v1127 = vunpack.c.h.b16 %v1067
        %v1128 = vpack.c.b16 %v1098, %v1096
        %v1129 = vpack.c.b16 %v1099, %v1097
        %v1130 = vpack.c.b16 %v1102, %v1100
        %v1131 = vpack.c.b16 %v1103, %v1101
        %v1132 = vpack.c.b16 %v1106, %v1104
        %v1133 = vpack.c.b16 %v1107, %v1105
        %v1134 = vpack.c.b16 %v1110, %v1108
        %v1135 = vpack.c.b16 %v1111, %v1109
        %v1136 = vpack.c.b16 %v1114, %v1112
        %v1137 = vpack.c.b16 %v1115, %v1113
        %v1138 = vpack.c.b16 %v1118, %v1116
        %v1139 = vpack.c.b16 %v1119, %v1117
        %v1140 = vpack.c.b16 %v1122, %v1120
        %v1141 = vpack.c.b16 %v1123, %v1121
        %v1142 = vpack.c.b16 %v1126, %v1124
        %v1143 = vpack.c.b16 %v1127, %v1125
        %1160 = vmatprep.subr.bf16.mxu0 %v1129
        %1161 = vmatpush1.bf16.msra.mxu0 %v1128
        %1162 = vmatprep.subr.bf16.mxu0 %v1131
        %1163 = vmatpush1.bf16.msra.mxu0 %v1130
        %1164 = vmatprep.subr.bf16.mxu0 %v1133
        %1165 = vmatpush1.bf16.msra.mxu0 %v1132
        %1166 = vmatprep.subr.bf16.mxu0 %v1135
        %1167 = vmatpush1.bf16.msra.mxu0 %v1134
        %1168 = vmatprep.subr.bf16.mxu0 %v1137
        %1169 = vmatpush1.bf16.msra.mxu0 %v1136
        %1170 = vmatprep.subr.bf16.mxu0 %v1139
        %1171 = vmatpush1.bf16.msra.mxu0 %v1138
        %1172 = vmatprep.subr.bf16.mxu0 %v1141
        %1173 = vmatpush1.bf16.msra.mxu0 %v1140
        %1174 = vmatprep.subr.bf16.mxu0 %v1143
        %1175 = vmatpush1.bf16.msra.mxu0 %v1142
        %1176 = vmatprep.subr.bf16.mxu0 0
        %1177 = vmatpush1.bf16.msra.mxu0 0
        %1178 = vmatprep.subr.bf16.mxu0 0
        %1179 = vmatpush1.bf16.msra.mxu0 0
        %1180 = vmatprep.subr.bf16.mxu0 0
        %1181 = vmatpush1.bf16.msra.mxu0 0
        %1182 = vmatprep.subr.bf16.mxu0 0
        %1183 = vmatpush1.bf16.msra.mxu0 0
        %1184 = vmatprep.subr.bf16.mxu0 0
        %1185 = vmatpush1.bf16.msra.mxu0 0
        %1186 = vmatprep.subr.bf16.mxu0 0
        %1187 = vmatpush1.bf16.msra.mxu0 0
        %1188 = vmatprep.subr.bf16.mxu0 0
        %1189 = vmatpush1.bf16.msra.mxu0 0
        %1190 = vmatprep.subr.bf16.mxu0 0
        %1191 = vmatpush1.bf16.msra.mxu0 0
        %1192 = vmatprep.mubr.bf16.mxu0 0
        %1193 = vmatmul.mubr.bf16.gmra.mrb[0].mxu0 %v1051
        %v1194 = vpop.f32.mrb[0].mxu0
        %v1195 = vadd.f32 %v1073, %v1194
        %v1196 = vpop.f32.mrb[0].mxu0
        %v1197 = vadd.f32 %v1077, %v1196
        %v1198 = vpop.f32.mrb[0].mxu0
        %v1199 = vadd.f32 %v1073, %v1198
        %v1200 = vpop.f32.mrb[0].mxu0
        %v1201 = vadd.f32 %v1077, %v1200
        %1202 = vdwg.mxu0
        %v1203 = vmax.f32 %v1195, %v1197
        %1204 = vmax.xlane.f32.xlu0 %v1203
        %v1205 = vpop.xlane.xlu0 %1204
        %v1206 = vmax.f32 %v1199, %v1201
        %1207 = vmax.xlane.f32.xlu0 %v1206
        %v1208 = vpop.xlane.xlu0 %1207
        %v1209 = vsub.f32 %v1195, %v1205
        %v1210 = vsub.f32 %v1197, %v1205
        %v1211 = vsub.f32 %v1199, %v1208
        %v1212 = vsub.f32 %v1201, %v1208
        %v1213 = vmul.f32 %v1209, 1.442695
        %v1214 = vpow.pop %v1213
        %v1215 = vmul.f32 %v1210, 1.442695
        %v1216 = vpow.pop %v1215
        %v1217 = vmul.f32 %v1211, 1.442695
        %v1218 = vpow.pop %v1217
        %v1219 = vmul.f32 %v1212, 1.442695
        %v1220 = vpow.pop %v1219
        %v1221 = vadd.f32 %v1214, %v1216
        %1222 = vadd.xlane.f32.xlu0 %v1221
        %v1223 = vpop.xlane.xlu0 %1222
        %v1224 = vadd.f32 %v1218, %v1220
        %1225 = vadd.xlane.f32.xlu0 %v1224
        %v1226 = vpop.xlane.xlu0 %1225
        %v1227 = vlog2.pop %v1223
        %v1228 = vmul.f32 %v1227, 0.6931472
        %v1229 = vlog2.pop %v1226
        %v1230 = vmul.f32 %v1229, 0.6931472
        %v1231 = vsub.f32 %v1209, %v1228
        %v1232 = vsub.f32 %v1210, %v1228
        %v1233 = vsub.f32 %v1211, %v1230
        %v1234 = vsub.f32 %v1212, %v1230
        %1235 = vst [vmem:[%s385] sm:$0xff] %v1231
        %1236 = vst [vmem:[%s385 + $0x8] sm:$0xff] %v1232
        %1237 = vst [vmem:[%s385 + $0x10] sm:$0xff] %v1233
        %1238 = vst [vmem:[%s385 + $0x18] sm:$0xff] %v1234
        %s1239 = sand.u32 %s209, 1
        %s1240 = scalar_lea.sflag [#allocation7], %s1239
        %s1241 = sand.u32 %s209, 1
        %s1242 = smul.addr %s1241, 32
        %s1243 = scalar_lea.vmem [#allocation14], %s1242
        // Predicated region
        $region77: #{_decode_impl.1} parent=51 // pred_check
          %p1244 = pneg %p219
        $region78: #{_decode_impl.1} parent=51 // pred_check_branch
          %1246 = sbr.rel (%p1244) target = $region80
        $region79: #{_decode_impl.1} parent=51 // pred_region
          %s1248 = ssub.s32 512, 512
          %1249 = vsyncadd %s1240, %s1248
          %s1250 = smul.addr %s33, 4
          %s1251 = smul.addr %s1250, 128
          %s1252 = scalar_lea.hbm %s9, %s1251
          %s1253 = sshll.u32 %s1243, 4
          %s1254 = int_to_ptr.vmem [resolvable:$true] %s1253
          %1259 = dma.vmem_to_hbm [thread:$0]  %s1254, 512, %s1252, %s1240, 256, 256, 16
        $region80: #{_decode_impl.1} parent=51 // pred_fallthru
          _
        // Predicated region
        $region81: #{_decode_impl.1} parent=51 // pred_check
          %p1260 = pneg %p240
        $region82: #{_decode_impl.1} parent=51 // pred_check_branch
          %1262 = sbr.rel (%p1260) target = $region84
        $region83: #{_decode_impl.1} parent=51 // pred_region
          %s1264 = ssub.s32 256, 256
          %1265 = vsyncadd [#allocation16], %s1264
          %s1266 = sshll.u32 [#allocation15], 4
          %s1267 = int_to_ptr.vmem [resolvable:$true] %s1266
          %1272 = dma.vmem_to_hbm [thread:$0]  %s1267, 256, %s10, [#allocation16], 128, 128, 8
        $region84: #{_decode_impl.1} parent=51 // pred_fallthru
          _
        // Predicated region
        $region85: #{_decode_impl.1} parent=51 // pred_check
          %p1273 = pneg %p240
        $region86: #{_decode_impl.1} parent=51 // pred_check_branch
          %1275 = sbr.rel (%p1273) target = $region88
        $region87: #{_decode_impl.1} parent=51 // pred_region
          %1276 = dma.done [#allocation16], 256
        $region88: #{_decode_impl.1} parent=51 // pred_fallthru
          _
      $region52: #{_decode_impl.1} parent=5 // pred_fallthru
        _
      %p1277 = scmp.le.s32.totalorder 2, %s28
      // Predicated region
      $region89: #{_decode_impl.1} parent=5 // pred_check
        %p1278 = pneg %p1277
      $region90: #{_decode_impl.1} parent=5 // pred_check_branch
        %1280 = sbr.rel (%p1278) target = $region92
      $region91: #{_decode_impl.1} parent=5 // pred_region
        %s1281 = ssub.s32 %s28, 2
        // Predicated region
        $region93: #{_decode_impl.1} parent=91 // pred_check
          %p1282 = pneg %p225
        $region94: #{_decode_impl.1} parent=91 // pred_check_branch
          %1284 = sbr.rel (%p1282) target = $region96
        $region95: #{_decode_impl.1} parent=91 // pred_region
          %s1285 = sand.u32 %s210, 1
          %s1286 = scalar_lea.sflag [#allocation7], %s1285
          %s1287 = sand.u32 %s210, 1
          %s1288 = smul.addr %s1287, 32
          %s1289 = scalar_lea.vmem [#allocation14], %s1288
          %1290 = dma.done %s1286, 512
        $region96: #{_decode_impl.1} parent=91 // pred_fallthru
          _
      $region92: #{_decode_impl.1} parent=5 // pred_fallthru
        _
    $region6: #{_decode_impl.1} parent=1 // loop_footer
      %s32 = sadd.s32 1, %s28
    $region7: #{_decode_impl.1} parent=1 // loop_footer_branch
      %27 = sbr.rel target = $region3
    $region8: #{_decode_impl.1} parent=1 // loop_exit
      _
    %1291 = vsyncpa [#allocation6], 1
    %s1292 = scalar_lea.sflag [#allocation6], 1
    %1293 = vsyncpa %s1292, 1
    %1294 = vsyncpa [#allocation9], 1
    %1295 = vsyncpa [#allocation12], 1
    %1296 = vsyncpa [#allocation7], 1
    %s1297 = scalar_lea.sflag [#allocation7], 1
    %1298 = vsyncpa %s1297, 1
    %1299 = vsyncpa [#allocation16], 1

</llo_original>
